<compile_context>
chip_gen: v6e
topology: v6e:2x2x1
jax: 0.10.0
libtpu: 0.0.40
codegen_flags: <defaults>
</compile_context>

<pallas_src>
import functools

import numpy as np
import jax
import jax.numpy as jnp
from jax.experimental import pallas as pl
from jax.experimental.pallas import tpu as pltpu


_VMEM_LIMIT_BYTES = 48 * 1024 * 1024   # leave headroom vs v7x's 64 MiB VMEM


# --------------------------- kernel 1: BN1 stats ---------------------------- #
def bn_stats_kernel(x_ref, pe_ref, stats_ref):
    """Per-batch-block sum / sum-of-squares of (x + pe) over (batch, seq)."""
    x = x_ref[...].astype(jnp.float32) + pe_ref[...].astype(jnp.float32)
    s = jnp.sum(x, axis=(0, 1), keepdims=True)            # (1, 1, D)
    sq = jnp.sum(x * x, axis=(0, 1), keepdims=True)       # (1, 1, D)
    stats_ref[...] = jnp.concatenate([s, sq], axis=1)     # (1, 2, D)


# ------------------ kernel 2: attention + pooling + BN2 stats --------------- #
def attention_kernel(x_ref, pe_ref, scale1_ref, shift1_ref, wqkv_ref, wfc_ref,
                     bfc_ref, pooled_ref, stats2_ref, *, heads, head_dim,
                     inv_sqrt_d):
    nb, seq, d = x_ref.shape
    f32 = jnp.float32

    # Positional encoding + BN1 as a precomputed per-feature affine (f32).
    x = x_ref[...].astype(f32) + pe_ref[...].astype(f32)          # (nb, S, D)
    xn = x * scale1_ref[...] + shift1_ref[...]

    # Fused Q/K/V projection: ONE (nb*S, D) x (D, 3D) bf16 matmul (the shared
    # Linear(head_dim, head_dim) weights are laid out block-diagonally in the
    # wrapper) instead of 3*heads tiny 8-wide matmuls + concat.
    xb = xn.astype(jnp.bfloat16).reshape(nb * seq, d)
    qkv = jnp.dot(xb, wqkv_ref[...], preferred_element_type=f32)  # (nb*S, 3D)
    q = qkv[:, 0:d].reshape(nb, seq, d)
    k = qkv[:, d:2 * d].reshape(nb, seq, d)
    v = qkv[:, 2 * d:3 * d].reshape(nb, seq, d)

    # Attention core. Per-head batching is semantically required here (softmax
    # is per head); a batched dot_general lowers to the same per-head MXU
    # pushes, so a small static loop keeps the lowering simple and robust.
    # Only MXU operands are bf16; max/exp/reciprocal stay in f32 (v5e-safe).
    head_outs = []
    for h in range(heads):
        lo, hi = h * head_dim, (h + 1) * head_dim
        qh = q[:, :, lo:hi].astype(jnp.bfloat16)
        kh = k[:, :, lo:hi].astype(jnp.bfloat16)
        vh = v[:, :, lo:hi].astype(jnp.bfloat16)
        energy = jnp.einsum('nqd,nkd->nqk', qh, kh,
                            preferred_element_type=f32) * inv_sqrt_d
        m = jnp.max(energy, axis=-1, keepdims=True)
        e = jnp.exp(energy - m)
        att = e * pl.reciprocal(jnp.sum(e, axis=-1, keepdims=True), approx=True)
        head_outs.append(jnp.einsum('nqk,nkd->nqd', att.astype(jnp.bfloat16),
                                    vh, preferred_element_type=f32))
    attn = jnp.concatenate(head_outs, axis=-1)                    # (nb, S, D)

    # fc_out: single flattened (nb*S, D) x (D, D) bf16 matmul + f32 bias.
    y = jnp.dot(attn.reshape(nb * seq, d).astype(jnp.bfloat16), wfc_ref[...],
                preferred_element_type=f32) + bfc_ref[...]        # (nb*S, D)

    # One-pass partial BN2 statistics for this block.
    s = jnp.sum(y, axis=0, keepdims=True)                          # (1, D)
    sq = jnp.sum(y * y, axis=0, keepdims=True)                     # (1, D)
    stats2_ref[...] = jnp.concatenate([s, sq], axis=0)[None]       # (1, 2, D)

    # Per-sample sequence mean of the pre-BN2 activations; BN2 (affine) is
    # folded into this pooled result in the wrapper.
    pooled_ref[...] = jnp.mean(y.reshape(nb, seq, d), axis=1)[None]  # (1, nb, D)


# ------------------------------ JAX wrapper -------------------------------- #
@functools.partial(jax.jit, static_argnames=("heads", "max_length", "batch_block"))
def timeseries_forward(x, params, *, heads, max_length, batch_block=1):
    n, s, d = x.shape
    head_dim = d // heads
    assert head_dim * heads == d
    assert n % batch_block == 0, "batch_block must divide the batch size"
    g = n // batch_block
    eps = float(max_length)            # BatchNorm1d(embed_dim, max_length) -> eps
    cnt = float(n * s)
    f32 = jnp.float32

    pe = params['pe'][:, :s, :].astype(f32)              # (1, S, D)
    gamma = params['gamma'][0].astype(f32)               # (D,)
    beta = params['beta'][0].astype(f32)                 # (D,)

    # Fused block-diagonal QKV weight, (in, out) = (D, 3D), cast once to bf16.
    eye_h = jnp.eye(heads, dtype=f32)
    wqkv = jnp.concatenate(
        [jnp.kron(eye_h, params['wq'].astype(f32)),
         jnp.kron(eye_h, params['wk'].astype(f32)),
         jnp.kron(eye_h, params['wv'].astype(f32))], axis=1).astype(jnp.bfloat16)
    wfc = params['wfc'].astype(jnp.bfloat16)             # (D, D)
    bfc = params['bfc'].astype(f32)                      # (1, D)

    cparams = pltpu.CompilerParams(
        dimension_semantics=("parallel",),               # 2nd TC on v7x
        vmem_limit_bytes=_VMEM_LIMIT_BYTES)

    # ---- pass 1: BN1 batch statistics (biased, training mode) ----
    stats1 = pl.pallas_call(
        bn_stats_kernel,
        grid=(g,),
        in_specs=[
            pl.BlockSpec((batch_block, s, d), lambda i: (i, 0, 0)),
            pl.BlockSpec((1, s, d), lambda i: (0, 0, 0)),      # invariant block
        ],
        out_specs=pl.BlockSpec((1, 2, d), lambda i: (i, 0, 0)),
        out_shape=jax.ShapeDtypeStruct((g, 2, d), f32),
        compiler_params=cparams,
    )(x, pe)
    st1 = jnp.sum(stats1, axis=0)                        # (2, D)
    mean1 = st1[0] / cnt
    var1 = st1[1] / cnt - mean1 * mean1                  # one-pass biased var
    inv1 = jax.lax.rsqrt(var1 + eps)
    scale1 = (gamma * inv1)[None]                        # (1, D)
    shift1 = (beta - mean1 * gamma * inv1)[None]         # (1, D)

    # ---- pass 2: attention block + pooled means + BN2 partial stats ----
    kernel = functools.partial(
        attention_kernel, heads=heads, head_dim=head_dim,
        inv_sqrt_d=1.0 / float(np.sqrt(d)))              # reference: 1/sqrt(embed_dim)
    pooled, stats2 = pl.pallas_call(
        kernel,
        grid=(g,),
        in_specs=[
            pl.BlockSpec((batch_block, s, d), lambda i: (i, 0, 0)),   # x
            pl.BlockSpec((1, s, d), lambda i: (0, 0, 0)),             # pe
            pl.BlockSpec((1, d), lambda i: (0, 0)),                   # BN1 scale
            pl.BlockSpec((1, d), lambda i: (0, 0)),                   # BN1 shift
            pl.BlockSpec((d, 3 * d), lambda i: (0, 0)),               # fused QKV (bf16)
            pl.BlockSpec((d, d), lambda i: (0, 0)),                   # fc_out W (bf16)
            pl.BlockSpec((1, d), lambda i: (0, 0)),                   # fc_out b
        ],
        out_specs=(
            pl.BlockSpec((1, batch_block, d), lambda i: (i, 0, 0)),
            pl.BlockSpec((1, 2, d), lambda i: (i, 0, 0)),
        ),
        out_shape=(
            jax.ShapeDtypeStruct((g, batch_block, d), f32),
            jax.ShapeDtypeStruct((g, 2, d), f32),
        ),
        compiler_params=cparams,
    )(x, pe, scale1, shift1, wqkv, wfc, bfc)

    # ---- epilogue on tiny (N, D) / (D, output_dim) tensors (lane-dense kernel
    # output; the 1-wide final Linear is done here in the wrapper) ----
    st2 = jnp.sum(stats2, axis=0)
    mean2 = st2[0] / cnt
    var2 = st2[1] / cnt - mean2 * mean2
    inv2 = jax.lax.rsqrt(var2 + eps)
    scale2 = gamma * inv2
    shift2 = beta - mean2 * scale2
    pooled = pooled.reshape(n, d) * scale2[None] + shift2[None]   # BN2 folded in
    y = pooled @ params['wout'] + params['bout'][0]
    return jnp.squeeze(y)                                          # torch .squeeze()


# --------------------------- pure-JAX f32 reference ------------------------- #
def reference_forward(x, params, *, heads, max_length):
    n, s, d = x.shape
    hd = d // heads
    eps = float(max_length)
    gamma, beta = params['gamma'], params['beta']

    x = x + params['pe'][:, :s, :]

    def bn(h):
        mean = jnp.mean(h, axis=(0, 1), keepdims=True)
        var = jnp.mean((h - mean) ** 2, axis=(0, 1), keepdims=True)
        return (h - mean) / jnp.sqrt(var + eps) * gamma[None] + beta[None]

    x = bn(x)
    xh = x.reshape(n, s, heads, hd)
    q = jnp.einsum('nshd,de->nshe', xh, params['wq'])
    k = jnp.einsum('nshd,de->nshe', xh, params['wk'])
    v = jnp.einsum('nshd,de->nshe', xh, params['wv'])
    energy = jnp.einsum('nqhd,nkhd->nhqk', q, k) / jnp.sqrt(float(d))
    att = jax.nn.softmax(energy, axis=3)
    out = jnp.einsum('nhqk,nkhd->nqhd', att, v).reshape(n, s, d)
    out = out @ params['wfc'] + params['bfc'][0]
    x = bn(out)
    pooled = jnp.mean(x, axis=1)
    y = pooled @ params['wout'] + params['bout'][0]
    return jnp.squeeze(y)


# ------------------------------- param init --------------------------------- #
def make_positional_encoding(max_len, d_model):
    position = np.arange(0.0, max_len)[:, None]
    div_term = np.exp(np.arange(0.0, d_model, 2) * -(np.log(10000.0) / d_model))
    ang = position * div_term
    pe = np.zeros((max_len, d_model), dtype=np.float32)
    pe[:, 0::2] = np.sin(ang)
    pe[:, 1::2] = np.cos(ang)
    return jnp.asarray(pe)[None]              # (1, max_len, d_model)


def init_params(key, embed_dim, heads, max_length, output_dim=1):
    hd = embed_dim // heads
    ks = jax.random.split(key, 6)
    scale_hd = 1.0 / np.sqrt(hd)
    scale_d = 1.0 / np.sqrt(embed_dim)
    return {
        'pe': make_positional_encoding(max_length, embed_dim),
        # Linear weights stored as (in_features, out_features)
        'wq': jax.random.uniform(ks[0], (hd, hd), jnp.float32, -scale_hd, scale_hd),
        'wk': jax.random.uniform(ks[1], (hd, hd), jnp.float32, -scale_hd, scale_hd),
        'wv': jax.random.uniform(ks[2], (hd, hd), jnp.float32, -scale_hd, scale_hd),
        'wfc': jax.random.uniform(ks[3], (embed_dim, embed_dim), jnp.float32,
                                  -scale_d, scale_d),
        'bfc': jax.random.uniform(ks[4], (1, embed_dim), jnp.float32,
                                  -scale_d, scale_d),
        'gamma': jnp.ones((1, embed_dim), jnp.float32),     # BatchNorm weight
        'beta': jnp.zeros((1, embed_dim), jnp.float32),     # BatchNorm bias
        'wout': jax.random.uniform(ks[5], (embed_dim, output_dim), jnp.float32,
                                   -scale_d, scale_d),
        'bout': jnp.zeros((1, output_dim), jnp.float32),
    }
    # TODO(synk): BatchNorm running-stat buffer updates (training side effect)
    # are not modeled; they do not affect the forward output.


# ---------------------------------- main ------------------------------------ #
if __name__ == "__main__":
    N, S, D, H = 2, 8, 32, 4          # batch, seq, embed_dim, heads
    MAX_LEN, OUT_DIM = 16, 1

    key = jax.random.PRNGKey(0)
    kx, kp = jax.random.split(key)
    x = jax.random.normal(kx, (N, S, D), jnp.float32)
    params = init_params(kp, D, H, MAX_LEN, OUT_DIM)

    y = timeseries_forward(x, params, heads=H, max_length=MAX_LEN, batch_block=1)
    y = jax.block_until_ready(y)

    y_ref = reference_forward(x, params, heads=H, max_length=MAX_LEN)
    # Tolerance reflects bf16 MXU operands (f32 accumulation) in the kernel
    # versus the all-f32 reference.
    np.testing.assert_allclose(np.asarray(y), np.asarray(y_ref),
                               rtol=3e-2, atol=3e-2)

    print("KERNEL_OK")
</pallas_src>

<mosaic_0001>
module attributes {stable_mosaic.version = 11 : i64} {
  func.func @bn_stats_kernel(%arg0: i32, %arg1: memref<1x8x32xf32, #tpu.memory_space<vmem>>, %arg2: memref<1x8x32xf32, #tpu.memory_space<vmem>>, %arg3: memref<1x2x32xf32, #tpu.memory_space<vmem>>) attributes {dimension_semantics = [#tpu.dimension_semantics<parallel>], iteration_bounds = array<i64: 2>, scalar_prefetch = 0 : i64, scratch_operands = 0 : i64, tpu.core_type = #tpu.core_type<tc>, window_params = [{transform_indices = @transform_0, window_bounds = array<i64: 1, 8, 32>}, {pipeline_mode = #tpu.pipeline_mode<synchronous>, transform_indices = @transform_1, window_bounds = array<i64: 1, 8, 32>}, {transform_indices = @transform_2, window_bounds = array<i64: 1, 2, 32>}]} {
    %c0 = arith.constant 0 : index
    %c0_0 = arith.constant 0 : index
    %c0_1 = arith.constant 0 : index
    %0 = vector.load %arg1[%c0, %c0_0, %c0_1] : memref<1x8x32xf32, #tpu.memory_space<vmem>>, vector<1x8x32xf32>
    %c0_2 = arith.constant 0 : index
    %c0_3 = arith.constant 0 : index
    %c0_4 = arith.constant 0 : index
    %1 = vector.load %arg2[%c0_2, %c0_3, %c0_4] : memref<1x8x32xf32, #tpu.memory_space<vmem>>, vector<1x8x32xf32>
    %2 = arith.addf %0, %1 : vector<1x8x32xf32>
    %cst = arith.constant dense<0.000000e+00> : vector<32xf32>
    %3 = vector.multi_reduction <add>, %2, %cst [0, 1] : vector<1x8x32xf32> to vector<32xf32>
    %4 = vector.shape_cast %3 : vector<32xf32> to vector<1x1x32xf32>
    %5 = arith.mulf %2, %2 : vector<1x8x32xf32>
    %cst_5 = arith.constant dense<0.000000e+00> : vector<32xf32>
    %6 = vector.multi_reduction <add>, %5, %cst_5 [0, 1] : vector<1x8x32xf32> to vector<32xf32>
    %7 = vector.shape_cast %6 : vector<32xf32> to vector<1x1x32xf32>
    %8 = tpu.concatenate %4, %7 in 1 : vector<1x1x32xf32>, vector<1x1x32xf32> -> vector<1x2x32xf32>
    %c0_6 = arith.constant 0 : index
    %c0_7 = arith.constant 0 : index
    %c0_8 = arith.constant 0 : index
    %9 = vector.load %arg3[%c0_6, %c0_7, %c0_8] : memref<1x2x32xf32, #tpu.memory_space<vmem>>, vector<1x2x32xf32>
    tpu.vector_store %arg3[%c0_6, %c0_7, %c0_8], %8 {strides = array<i32>} : memref<1x2x32xf32, #tpu.memory_space<vmem>>, vector<1x2x32xf32>,
    return
  }
  func.func @transform_0(%arg0: i32) -> (i32, i32, i32) {
    %c0_i32 = arith.constant 0 : i32
    %c0_i32_0 = arith.constant 0 : i32
    %c0_i32_1 = arith.constant 0 : i32
    return %arg0, %c0_i32, %c0_i32_0 : i32, i32, i32
  }
  func.func @transform_1(%arg0: i32) -> (i32, i32, i32) {
    %c0_i32 = arith.constant 0 : i32
    %c0_i32_0 = arith.constant 0 : i32
    %c0_i32_1 = arith.constant 0 : i32
    %c0_i32_2 = arith.constant 0 : i32
    return %c0_i32, %c0_i32_0, %c0_i32_1 : i32, i32, i32
  }
  func.func @transform_2(%arg0: i32) -> (i32, i32, i32) {
    %c0_i32 = arith.constant 0 : i32
    %c0_i32_0 = arith.constant 0 : i32
    %c0_i32_1 = arith.constant 0 : i32
    return %arg0, %c0_i32, %c0_i32_0 : i32, i32, i32
  }
}

module attributes {stable_mosaic.version = 11 : i64} {
  func.func @attention_kernel(%arg0: i32, %arg1: memref<1x8x32xf32, #tpu.memory_space<vmem>>, %arg2: memref<1x8x32xf32, #tpu.memory_space<vmem>>, %arg3: memref<1x32xf32, #tpu.memory_space<vmem>>, %arg4: memref<1x32xf32, #tpu.memory_space<vmem>>, %arg5: memref<32x96xbf16, #tpu.memory_space<vmem>>, %arg6: memref<32x32xbf16, #tpu.memory_space<vmem>>, %arg7: memref<1x32xf32, #tpu.memory_space<vmem>>, %arg8: memref<1x1x32xf32, #tpu.memory_space<vmem>>, %arg9: memref<1x2x32xf32, #tpu.memory_space<vmem>>) attributes {dimension_semantics = [#tpu.dimension_semantics<parallel>], iteration_bounds = array<i64: 2>, scalar_prefetch = 0 : i64, scratch_operands = 0 : i64, tpu.core_type = #tpu.core_type<tc>, window_params = [{transform_indices = @transform_0, window_bounds = array<i64: 1, 8, 32>}, {pipeline_mode = #tpu.pipeline_mode<synchronous>, transform_indices = @transform_1, window_bounds = array<i64: 1, 8, 32>}, {pipeline_mode = #tpu.pipeline_mode<synchronous>, transform_indices = @transform_2, window_bounds = array<i64: 1, 32>}, {pipeline_mode = #tpu.pipeline_mode<synchronous>, transform_indices = @transform_3, window_bounds = array<i64: 1, 32>}, {pipeline_mode = #tpu.pipeline_mode<synchronous>, transform_indices = @transform_4, window_bounds = array<i64: 32, 96>}, {pipeline_mode = #tpu.pipeline_mode<synchronous>, transform_indices = @transform_5, window_bounds = array<i64: 32, 32>}, {pipeline_mode = #tpu.pipeline_mode<synchronous>, transform_indices = @transform_6, window_bounds = array<i64: 1, 32>}, {transform_indices = @transform_7, window_bounds = array<i64: 1, 1, 32>}, {transform_indices = @transform_8, window_bounds = array<i64: 1, 2, 32>}]} {
    %c0 = arith.constant 0 : index
    %c0_0 = arith.constant 0 : index
    %c0_1 = arith.constant 0 : index
    %0 = vector.load %arg1[%c0, %c0_0, %c0_1] : memref<1x8x32xf32, #tpu.memory_space<vmem>>, vector<1x8x32xf32>
    %c0_2 = arith.constant 0 : index
    %c0_3 = arith.constant 0 : index
    %c0_4 = arith.constant 0 : index
    %1 = vector.load %arg2[%c0_2, %c0_3, %c0_4] : memref<1x8x32xf32, #tpu.memory_space<vmem>>, vector<1x8x32xf32>
    %2 = arith.addf %0, %1 : vector<1x8x32xf32>
    %c0_5 = arith.constant 0 : index
    %c0_6 = arith.constant 0 : index
    %3 = vector.load %arg3[%c0_5, %c0_6] : memref<1x32xf32, #tpu.memory_space<vmem>>, vector<1x32xf32>
    %4 = vector.shape_cast %3 : vector<1x32xf32> to vector<1x1x32xf32>
    %5 = vector.broadcast %4 : vector<1x1x32xf32> to vector<1x8x32xf32>
    %6 = arith.mulf %2, %5 : vector<1x8x32xf32>
    %c0_7 = arith.constant 0 : index
    %c0_8 = arith.constant 0 : index
    %7 = vector.load %arg4[%c0_7, %c0_8] : memref<1x32xf32, #tpu.memory_space<vmem>>, vector<1x32xf32>
    %8 = vector.shape_cast %7 : vector<1x32xf32> to vector<1x1x32xf32>
    %9 = vector.broadcast %8 : vector<1x1x32xf32> to vector<1x8x32xf32>
    %10 = arith.addf %6, %9 : vector<1x8x32xf32>
    %11 = arith.truncf %10 : vector<1x8x32xf32> to vector<1x8x32xbf16>
    %12 = vector.shape_cast %11 : vector<1x8x32xbf16> to vector<8x32xbf16>
    %c0_9 = arith.constant 0 : index
    %c0_10 = arith.constant 0 : index
    %13 = vector.load %arg5[%c0_9, %c0_10] : memref<32x96xbf16, #tpu.memory_space<vmem>>, vector<32x96xbf16>
    %cst = arith.constant dense<0.000000e+00> : vector<8x96xf32>
    %14 = tpu.matmul %12, %13, %cst {dimension_numbers = #tpu.dot_dimension_numbers<[1], [0], [0], [1], [0, 0, 1, 1], [], []>} : vector<8x32xbf16>, vector<32x96xbf16>, vector<8x96xf32> -> vector<8x96xf32>
    %15 = vector.extract_strided_slice %14 {offsets = [0, 0], sizes = [8, 32], strides = [1, 1]} : vector<8x96xf32> to vector<8x32xf32>
    %16 = vector.shape_cast %15 : vector<8x32xf32> to vector<1x8x32xf32>
    %17 = vector.extract_strided_slice %14 {offsets = [0, 32], sizes = [8, 32], strides = [1, 1]} : vector<8x96xf32> to vector<8x32xf32>
    %18 = vector.shape_cast %17 : vector<8x32xf32> to vector<1x8x32xf32>
    %19 = vector.extract_strided_slice %14 {offsets = [0, 64], sizes = [8, 32], strides = [1, 1]} : vector<8x96xf32> to vector<8x32xf32>
    %20 = vector.shape_cast %19 : vector<8x32xf32> to vector<1x8x32xf32>
    %21 = vector.extract_strided_slice %16 {offsets = [0, 0, 0], sizes = [1, 8, 8], strides = [1, 1, 1]} : vector<1x8x32xf32> to vector<1x8x8xf32>
    %22 = arith.truncf %21 : vector<1x8x8xf32> to vector<1x8x8xbf16>
    %23 = vector.extract_strided_slice %18 {offsets = [0, 0, 0], sizes = [1, 8, 8], strides = [1, 1, 1]} : vector<1x8x32xf32> to vector<1x8x8xf32>
    %24 = arith.truncf %23 : vector<1x8x8xf32> to vector<1x8x8xbf16>
    %25 = vector.extract_strided_slice %20 {offsets = [0, 0, 0], sizes = [1, 8, 8], strides = [1, 1, 1]} : vector<1x8x32xf32> to vector<1x8x8xf32>
    %26 = arith.truncf %25 : vector<1x8x8xf32> to vector<1x8x8xbf16>
    "tpu.trace_start"() <{level = 10 : i32, message = "nqd,nkd->nqk"}> : () -> ()
    %cst_11 = arith.constant dense<0.000000e+00> : vector<1x8x8xf32>
    %27 = tpu.matmul %22, %24, %cst_11 {dimension_numbers = #tpu.dot_dimension_numbers<[2], [2], [1], [1], [0, 0, 0, 1, 1, 1], [0], [0]>} : vector<1x8x8xbf16>, vector<1x8x8xbf16>, vector<1x8x8xf32> -> vector<1x8x8xf32>
    "tpu.trace_stop"() : () -> ()
    %cst_12 = arith.constant 0.176776692 : f32
    %28 = vector.broadcast %cst_12 : f32 to vector<1x8x8xf32>
    %29 = arith.mulf %27, %28 : vector<1x8x8xf32>
    %cst_13 = arith.constant dense<0xFF800000> : vector<1x8xf32>
    %30 = vector.multi_reduction <maximumf>, %29, %cst_13 [2] : vector<1x8x8xf32> to vector<1x8xf32>
    %31 = vector.shape_cast %30 : vector<1x8xf32> to vector<1x8x1xf32>
    %32 = vector.broadcast %31 : vector<1x8x1xf32> to vector<1x8x8xf32>
    %33 = arith.subf %29, %32 : vector<1x8x8xf32>
    %34 = math.exp %33 : vector<1x8x8xf32>
    %cst_14 = arith.constant dense<0.000000e+00> : vector<1x8xf32>
    %35 = vector.multi_reduction <add>, %34, %cst_14 [2] : vector<1x8x8xf32> to vector<1x8xf32>
    %36 = vector.shape_cast %35 : vector<1x8xf32> to vector<1x8x1xf32>
    %37 = tpu.reciprocal %36 {approx = true} : vector<1x8x1xf32> -> vector<1x8x1xf32>
    %38 = vector.broadcast %37 : vector<1x8x1xf32> to vector<1x8x8xf32>
    %39 = arith.mulf %34, %38 : vector<1x8x8xf32>
    %40 = arith.truncf %39 : vector<1x8x8xf32> to vector<1x8x8xbf16>
    "tpu.trace_start"() <{level = 10 : i32, message = "nqk,nkd->nqd"}> : () -> ()
    %cst_15 = arith.constant dense<0.000000e+00> : vector<1x8x8xf32>
    %41 = tpu.matmul %40, %26, %cst_15 {dimension_numbers = #tpu.dot_dimension_numbers<[2], [1], [1], [2], [0, 0, 0, 1, 1, 2], [0], [0]>} : vector<1x8x8xbf16>, vector<1x8x8xbf16>, vector<1x8x8xf32> -> vector<1x8x8xf32>
    "tpu.trace_stop"() : () -> ()
    %42 = vector.extract_strided_slice %16 {offsets = [0, 0, 8], sizes = [1, 8, 8], strides = [1, 1, 1]} : vector<1x8x32xf32> to vector<1x8x8xf32>
    %43 = arith.truncf %42 : vector<1x8x8xf32> to vector<1x8x8xbf16>
    %44 = vector.extract_strided_slice %18 {offsets = [0, 0, 8], sizes = [1, 8, 8], strides = [1, 1, 1]} : vector<1x8x32xf32> to vector<1x8x8xf32>
    %45 = arith.truncf %44 : vector<1x8x8xf32> to vector<1x8x8xbf16>
    %46 = vector.extract_strided_slice %20 {offsets = [0, 0, 8], sizes = [1, 8, 8], strides = [1, 1, 1]} : vector<1x8x32xf32> to vector<1x8x8xf32>
    %47 = arith.truncf %46 : vector<1x8x8xf32> to vector<1x8x8xbf16>
    "tpu.trace_start"() <{level = 10 : i32, message = "nqd,nkd->nqk"}> : () -> ()
    %cst_16 = arith.constant dense<0.000000e+00> : vector<1x8x8xf32>
    %48 = tpu.matmul %43, %45, %cst_16 {dimension_numbers = #tpu.dot_dimension_numbers<[2], [2], [1], [1], [0, 0, 0, 1, 1, 1], [0], [0]>} : vector<1x8x8xbf16>, vector<1x8x8xbf16>, vector<1x8x8xf32> -> vector<1x8x8xf32>
    "tpu.trace_stop"() : () -> ()
    %cst_17 = arith.constant 0.176776692 : f32
    %49 = vector.broadcast %cst_17 : f32 to vector<1x8x8xf32>
    %50 = arith.mulf %48, %49 : vector<1x8x8xf32>
    %cst_18 = arith.constant dense<0xFF800000> : vector<1x8xf32>
    %51 = vector.multi_reduction <maximumf>, %50, %cst_18 [2] : vector<1x8x8xf32> to vector<1x8xf32>
    %52 = vector.shape_cast %51 : vector<1x8xf32> to vector<1x8x1xf32>
    %53 = vector.broadcast %52 : vector<1x8x1xf32> to vector<1x8x8xf32>
    %54 = arith.subf %50, %53 : vector<1x8x8xf32>
    %55 = math.exp %54 : vector<1x8x8xf32>
    %cst_19 = arith.constant dense<0.000000e+00> : vector<1x8xf32>
    %56 = vector.multi_reduction <add>, %55, %cst_19 [2] : vector<1x8x8xf32> to vector<1x8xf32>
    %57 = vector.shape_cast %56 : vector<1x8xf32> to vector<1x8x1xf32>
    %58 = tpu.reciprocal %57 {approx = true} : vector<1x8x1xf32> -> vector<1x8x1xf32>
    %59 = vector.broadcast %58 : vector<1x8x1xf32> to vector<1x8x8xf32>
    %60 = arith.mulf %55, %59 : vector<1x8x8xf32>
    %61 = arith.truncf %60 : vector<1x8x8xf32> to vector<1x8x8xbf16>
    "tpu.trace_start"() <{level = 10 : i32, message = "nqk,nkd->nqd"}> : () -> ()
    %cst_20 = arith.constant dense<0.000000e+00> : vector<1x8x8xf32>
    %62 = tpu.matmul %61, %47, %cst_20 {dimension_numbers = #tpu.dot_dimension_numbers<[2], [1], [1], [2], [0, 0, 0, 1, 1, 2], [0], [0]>} : vector<1x8x8xbf16>, vector<1x8x8xbf16>, vector<1x8x8xf32> -> vector<1x8x8xf32>
    "tpu.trace_stop"() : () -> ()
    %63 = vector.extract_strided_slice %16 {offsets = [0, 0, 16], sizes = [1, 8, 8], strides = [1, 1, 1]} : vector<1x8x32xf32> to vector<1x8x8xf32>
    %64 = arith.truncf %63 : vector<1x8x8xf32> to vector<1x8x8xbf16>
    %65 = vector.extract_strided_slice %18 {offsets = [0, 0, 16], sizes = [1, 8, 8], strides = [1, 1, 1]} : vector<1x8x32xf32> to vector<1x8x8xf32>
    %66 = arith.truncf %65 : vector<1x8x8xf32> to vector<1x8x8xbf16>
    %67 = vector.extract_strided_slice %20 {offsets = [0, 0, 16], sizes = [1, 8, 8], strides = [1, 1, 1]} : vector<1x8x32xf32> to vector<1x8x8xf32>
    %68 = arith.truncf %67 : vector<1x8x8xf32> to vector<1x8x8xbf16>
    "tpu.trace_start"() <{level = 10 : i32, message = "nqd,nkd->nqk"}> : () -> ()
    %cst_21 = arith.constant dense<0.000000e+00> : vector<1x8x8xf32>
    %69 = tpu.matmul %64, %66, %cst_21 {dimension_numbers = #tpu.dot_dimension_numbers<[2], [2], [1], [1], [0, 0, 0, 1, 1, 1], [0], [0]>} : vector<1x8x8xbf16>, vector<1x8x8xbf16>, vector<1x8x8xf32> -> vector<1x8x8xf32>
    "tpu.trace_stop"() : () -> ()
    %cst_22 = arith.constant 0.176776692 : f32
    %70 = vector.broadcast %cst_22 : f32 to vector<1x8x8xf32>
    %71 = arith.mulf %69, %70 : vector<1x8x8xf32>
    %cst_23 = arith.constant dense<0xFF800000> : vector<1x8xf32>
    %72 = vector.multi_reduction <maximumf>, %71, %cst_23 [2] : vector<1x8x8xf32> to vector<1x8xf32>
    %73 = vector.shape_cast %72 : vector<1x8xf32> to vector<1x8x1xf32>
    %74 = vector.broadcast %73 : vector<1x8x1xf32> to vector<1x8x8xf32>
    %75 = arith.subf %71, %74 : vector<1x8x8xf32>
    %76 = math.exp %75 : vector<1x8x8xf32>
    %cst_24 = arith.constant dense<0.000000e+00> : vector<1x8xf32>
    %77 = vector.multi_reduction <add>, %76, %cst_24 [2] : vector<1x8x8xf32> to vector<1x8xf32>
    %78 = vector.shape_cast %77 : vector<1x8xf32> to vector<1x8x1xf32>
    %79 = tpu.reciprocal %78 {approx = true} : vector<1x8x1xf32> -> vector<1x8x1xf32>
    %80 = vector.broadcast %79 : vector<1x8x1xf32> to vector<1x8x8xf32>
    %81 = arith.mulf %76, %80 : vector<1x8x8xf32>
    %82 = arith.truncf %81 : vector<1x8x8xf32> to vector<1x8x8xbf16>
    "tpu.trace_start"() <{level = 10 : i32, message = "nqk,nkd->nqd"}> : () -> ()
    %cst_25 = arith.constant dense<0.000000e+00> : vector<1x8x8xf32>
    %83 = tpu.matmul %82, %68, %cst_25 {dimension_numbers = #tpu.dot_dimension_numbers<[2], [1], [1], [2], [0, 0, 0, 1, 1, 2], [0], [0]>} : vector<1x8x8xbf16>, vector<1x8x8xbf16>, vector<1x8x8xf32> -> vector<1x8x8xf32>
    "tpu.trace_stop"() : () -> ()
    %84 = vector.extract_strided_slice %16 {offsets = [0, 0, 24], sizes = [1, 8, 8], strides = [1, 1, 1]} : vector<1x8x32xf32> to vector<1x8x8xf32>
    %85 = arith.truncf %84 : vector<1x8x8xf32> to vector<1x8x8xbf16>
    %86 = vector.extract_strided_slice %18 {offsets = [0, 0, 24], sizes = [1, 8, 8], strides = [1, 1, 1]} : vector<1x8x32xf32> to vector<1x8x8xf32>
    %87 = arith.truncf %86 : vector<1x8x8xf32> to vector<1x8x8xbf16>
    %88 = vector.extract_strided_slice %20 {offsets = [0, 0, 24], sizes = [1, 8, 8], strides = [1, 1, 1]} : vector<1x8x32xf32> to vector<1x8x8xf32>
    %89 = arith.truncf %88 : vector<1x8x8xf32> to vector<1x8x8xbf16>
    "tpu.trace_start"() <{level = 10 : i32, message = "nqd,nkd->nqk"}> : () -> ()
    %cst_26 = arith.constant dense<0.000000e+00> : vector<1x8x8xf32>
    %90 = tpu.matmul %85, %87, %cst_26 {dimension_numbers = #tpu.dot_dimension_numbers<[2], [2], [1], [1], [0, 0, 0, 1, 1, 1], [0], [0]>} : vector<1x8x8xbf16>, vector<1x8x8xbf16>, vector<1x8x8xf32> -> vector<1x8x8xf32>
    "tpu.trace_stop"() : () -> ()
    %cst_27 = arith.constant 0.176776692 : f32
    %91 = vector.broadcast %cst_27 : f32 to vector<1x8x8xf32>
    %92 = arith.mulf %90, %91 : vector<1x8x8xf32>
    %cst_28 = arith.constant dense<0xFF800000> : vector<1x8xf32>
    %93 = vector.multi_reduction <maximumf>, %92, %cst_28 [2] : vector<1x8x8xf32> to vector<1x8xf32>
    %94 = vector.shape_cast %93 : vector<1x8xf32> to vector<1x8x1xf32>
    %95 = vector.broadcast %94 : vector<1x8x1xf32> to vector<1x8x8xf32>
    %96 = arith.subf %92, %95 : vector<1x8x8xf32>
    %97 = math.exp %96 : vector<1x8x8xf32>
    %cst_29 = arith.constant dense<0.000000e+00> : vector<1x8xf32>
    %98 = vector.multi_reduction <add>, %97, %cst_29 [2] : vector<1x8x8xf32> to vector<1x8xf32>
    %99 = vector.shape_cast %98 : vector<1x8xf32> to vector<1x8x1xf32>
    %100 = tpu.reciprocal %99 {approx = true} : vector<1x8x1xf32> -> vector<1x8x1xf32>
    %101 = vector.broadcast %100 : vector<1x8x1xf32> to vector<1x8x8xf32>
    %102 = arith.mulf %97, %101 : vector<1x8x8xf32>
    %103 = arith.truncf %102 : vector<1x8x8xf32> to vector<1x8x8xbf16>
    "tpu.trace_start"() <{level = 10 : i32, message = "nqk,nkd->nqd"}> : () -> ()
    %cst_30 = arith.constant dense<0.000000e+00> : vector<1x8x8xf32>
    %104 = tpu.matmul %103, %89, %cst_30 {dimension_numbers = #tpu.dot_dimension_numbers<[2], [1], [1], [2], [0, 0, 0, 1, 1, 2], [0], [0]>} : vector<1x8x8xbf16>, vector<1x8x8xbf16>, vector<1x8x8xf32> -> vector<1x8x8xf32>
    "tpu.trace_stop"() : () -> ()
    %105 = tpu.concatenate %41, %62, %83, %104 in 2 : vector<1x8x8xf32>, vector<1x8x8xf32>, vector<1x8x8xf32>, vector<1x8x8xf32> -> vector<1x8x32xf32>
    %106 = vector.shape_cast %105 : vector<1x8x32xf32> to vector<8x32xf32>
    %107 = arith.truncf %106 : vector<8x32xf32> to vector<8x32xbf16>
    %c0_31 = arith.constant 0 : index
    %c0_32 = arith.constant 0 : index
    %108 = vector.load %arg6[%c0_31, %c0_32] : memref<32x32xbf16, #tpu.memory_space<vmem>>, vector<32x32xbf16>
    %cst_33 = arith.constant dense<0.000000e+00> : vector<8x32xf32>
    %109 = tpu.matmul %107, %108, %cst_33 {dimension_numbers = #tpu.dot_dimension_numbers<[1], [0], [0], [1], [0, 0, 1, 1], [], []>} : vector<8x32xbf16>, vector<32x32xbf16>, vector<8x32xf32> -> vector<8x32xf32>
    %c0_34 = arith.constant 0 : index
    %c0_35 = arith.constant 0 : index
    %110 = vector.load %arg7[%c0_34, %c0_35] : memref<1x32xf32, #tpu.memory_space<vmem>>, vector<1x32xf32>
    %111 = vector.broadcast %110 : vector<1x32xf32> to vector<8x32xf32>
    %112 = arith.addf %109, %111 : vector<8x32xf32>
    %cst_36 = arith.constant dense<0.000000e+00> : vector<32xf32>
    %113 = vector.multi_reduction <add>, %112, %cst_36 [0] : vector<8x32xf32> to vector<32xf32>
    %114 = vector.shape_cast %113 : vector<32xf32> to vector<1x32xf32>
    %115 = arith.mulf %112, %112 : vector<8x32xf32>
    %cst_37 = arith.constant dense<0.000000e+00> : vector<32xf32>
    %116 = vector.multi_reduction <add>, %115, %cst_37 [0] : vector<8x32xf32> to vector<32xf32>
    %117 = vector.shape_cast %116 : vector<32xf32> to vector<1x32xf32>
    %118 = tpu.concatenate %114, %117 in 0 : vector<1x32xf32>, vector<1x32xf32> -> vector<2x32xf32>
    %119 = vector.shape_cast %118 : vector<2x32xf32> to vector<1x2x32xf32>
    %c0_38 = arith.constant 0 : index
    %c0_39 = arith.constant 0 : index
    %c0_40 = arith.constant 0 : index
    %120 = vector.load %arg9[%c0_38, %c0_39, %c0_40] : memref<1x2x32xf32, #tpu.memory_space<vmem>>, vector<1x2x32xf32>
    tpu.vector_store %arg9[%c0_38, %c0_39, %c0_40], %119 {strides = array<i32>} : memref<1x2x32xf32, #tpu.memory_space<vmem>>, vector<1x2x32xf32>,
    %121 = vector.shape_cast %112 : vector<8x32xf32> to vector<1x8x32xf32>
    %cst_41 = arith.constant dense<0.000000e+00> : vector<1x32xf32>
    %122 = vector.multi_reduction <add>, %121, %cst_41 [1] : vector<1x8x32xf32> to vector<1x32xf32>
    %cst_42 = arith.constant 8.000000e+00 : f32
    %123 = vector.broadcast %cst_42 : f32 to vector<1x32xf32>
    %124 = arith.divf %122, %123 : vector<1x32xf32>
    %125 = vector.shape_cast %124 : vector<1x32xf32> to vector<1x1x32xf32>
    %c0_43 = arith.constant 0 : index
    %c0_44 = arith.constant 0 : index
    %c0_45 = arith.constant 0 : index
    %126 = vector.load %arg8[%c0_43, %c0_44, %c0_45] : memref<1x1x32xf32, #tpu.memory_space<vmem>>, vector<1x1x32xf32>
    tpu.vector_store %arg8[%c0_43, %c0_44, %c0_45], %125 {strides = array<i32>} : memref<1x1x32xf32, #tpu.memory_space<vmem>>, vector<1x1x32xf32>,
    return
  }
  func.func @transform_0(%arg0: i32) -> (i32, i32, i32) {
    %c0_i32 = arith.constant 0 : i32
    %c0_i32_0 = arith.constant 0 : i32
    %c0_i32_1 = arith.constant 0 : i32
    return %arg0, %c0_i32, %c0_i32_0 : i32, i32, i32
  }
  func.func @transform_1(%arg0: i32) -> (i32, i32, i32) {
    %c0_i32 = arith.constant 0 : i32
    %c0_i32_0 = arith.constant 0 : i32
    %c0_i32_1 = arith.constant 0 : i32
    %c0_i32_2 = arith.constant 0 : i32
    return %c0_i32, %c0_i32_0, %c0_i32_1 : i32, i32, i32
  }
  func.func @transform_2(%arg0: i32) -> (i32, i32) {
    %c0_i32 = arith.constant 0 : i32
    %c0_i32_0 = arith.constant 0 : i32
    %c0_i32_1 = arith.constant 0 : i32
    return %c0_i32, %c0_i32_0 : i32, i32
  }
  func.func @transform_3(%arg0: i32) -> (i32, i32) {
    %c0_i32 = arith.constant 0 : i32
    %c0_i32_0 = arith.constant 0 : i32
    %c0_i32_1 = arith.constant 0 : i32
    return %c0_i32, %c0_i32_0 : i32, i32
  }
  func.func @transform_4(%arg0: i32) -> (i32, i32) {
    %c0_i32 = arith.constant 0 : i32
    %c0_i32_0 = arith.constant 0 : i32
    %c0_i32_1 = arith.constant 0 : i32
    return %c0_i32, %c0_i32_0 : i32, i32
  }
  func.func @transform_5(%arg0: i32) -> (i32, i32) {
    %c0_i32 = arith.constant 0 : i32
    %c0_i32_0 = arith.constant 0 : i32
    %c0_i32_1 = arith.constant 0 : i32
    return %c0_i32, %c0_i32_0 : i32, i32
  }
  func.func @transform_6(%arg0: i32) -> (i32, i32) {
    %c0_i32 = arith.constant 0 : i32
    %c0_i32_0 = arith.constant 0 : i32
    %c0_i32_1 = arith.constant 0 : i32
    return %c0_i32, %c0_i32_0 : i32, i32
  }
  func.func @transform_7(%arg0: i32) -> (i32, i32, i32) {
    %c0_i32 = arith.constant 0 : i32
    %c0_i32_0 = arith.constant 0 : i32
    %c0_i32_1 = arith.constant 0 : i32
    return %arg0, %c0_i32, %c0_i32_0 : i32, i32, i32
  }
  func.func @transform_8(%arg0: i32) -> (i32, i32, i32) {
    %c0_i32 = arith.constant 0 : i32
    %c0_i32_0 = arith.constant 0 : i32
    %c0_i32_1 = arith.constant 0 : i32
    return %arg0, %c0_i32, %c0_i32_0 : i32, i32, i32
  }
}

</mosaic_0001>

<llo_original>
// kernel: timeseries_forward.2
$region0: #{timeseries_forward.2}
  #allocation0 [shape = 'u32[]', space=smem, size = 0x4, offset = 0x4, fixed_abs, tag = 'smem constant byte address 0x4 - core index']
  #allocation1 [shape = 'u32[144,128]{1,0:T(1,128)}', space=vmem, size = 0x12000, scoped, tag = 'internal scratch']
  %s0 = inlined_call_operand.vmem [shape: f32[2,8,32], index: 0, kind: input, shape index: {}]
  %s1 = inlined_call_operand.vmem [shape: f32[1,8,32], index: 1, kind: input, shape index: {}]
  %s2 = inlined_call_operand.vmem [shape: f32[2,2,32], index: 2, kind: output, shape index: {}]
  %s3 = sld [smem:[#allocation0]]
  $region41: #{timeseries_forward.2} parent=0
    _
  %s5 = ssub.s32 1, %s3
  %s6 = scalar_select 0, %s5, %s3
  loop: start=0, step=1, limit=4
  $region2: #{timeseries_forward.2} parent=0 // loop_pre_header
    _
  $region3: #{timeseries_forward.2} parent=0 // loop_header
    %s8 = sphi 0, %s12
    %p9 = scmp.ge.s32.totalorder %s8, 4
    %s18 = sphi 0, %s20
    %s21 = sphi 0, %s18
    %s22 = sphi 0, %s21
    %s38 = sphi 0, %s22
    %s42 = sphi 0, %s42
    %s44 = sphi 0, %s42
    %s45 = sphi 0, %s44
    %s59 = sphi 0, %s45
    %s65 = sphi 0, %s67
    %s68 = sphi 0, %s65
    %s69 = sphi 0, %s68
    %s85 = sphi 0, %s69
  $region4: #{timeseries_forward.2} parent=0 // loop_header_branch
    %11 = sbr.rel (%p9) target = $region8
  $region5: #{timeseries_forward.2} parent=0 // loop_body
    %s13 = ssub.s32 %s8, 1
    %s14 = ssub.s32 %s8, 2
    %s15 = sadd.s32 %s8, 1
    %s16 = ssub.s32 %s8, %s15
    %p17 = scmp.eq.s32.totalorder %s16, 0
    %s19 = sadd.s32 %s18, 1
    %s20 = scalar_select %p17, %s18, %s19
    %p23 = pneg %p17
    %p24 = scmp.eq.s32.totalorder %s8, 1
    %p25 = por %p23, %p24
    %p26 = scmp.ne.s32.totalorder %s18, %s21
    %p27 = scmp.eq.s32.totalorder %s8, 0
    %p28 = por %p26, %p27
    %p29 = scmp.ne.s32.totalorder %s18, %s21
    %p30 = scmp.eq.s32.totalorder %s13, 1
    %p31 = por %p29, %p30
    %p32 = scmp.ne.s32.totalorder %s21, %s22
    %p33 = scmp.eq.s32.totalorder %s13, 0
    %p34 = por %p32, %p33
    %p35 = scmp.ne.s32.totalorder %s21, %s22
    %p36 = scmp.eq.s32.totalorder %s14, 1
    %p37 = por %p35, %p36
    %p39 = scmp.ne.s32.totalorder %s22, %s38
    %p40 = scmp.eq.s32.totalorder %s14, 0
    %p41 = por %p39, %p40
    %s43 = sadd.s32 %s42, 1
    %p46 = scmp.eq.s32.totalorder %s8, 1
    %p47 = scmp.ne.s32.totalorder %s42, %s44
    %p48 = scmp.eq.s32.totalorder %s8, 0
    %p49 = por %p47, %p48
    %p50 = scmp.ne.s32.totalorder %s42, %s44
    %p51 = scmp.eq.s32.totalorder %s13, 1
    %p52 = por %p50, %p51
    %p53 = scmp.ne.s32.totalorder %s44, %s45
    %p54 = scmp.eq.s32.totalorder %s13, 0
    %p55 = por %p53, %p54
    %p56 = scmp.ne.s32.totalorder %s44, %s45
    %p57 = scmp.eq.s32.totalorder %s14, 1
    %p58 = por %p56, %p57
    %p60 = scmp.ne.s32.totalorder %s45, %s59
    %p61 = scmp.eq.s32.totalorder %s14, 0
    %p62 = por %p60, %p61
    %s63 = ssub.s32 %s8, %s15
    %p64 = scmp.eq.s32.totalorder %s63, 0
    %s66 = sadd.s32 %s65, 1
    %s67 = scalar_select %p64, %s65, %s66
    %p70 = pneg %p64
    %p71 = scmp.eq.s32.totalorder %s8, 1
    %p72 = por %p70, %p71
    %p73 = scmp.ne.s32.totalorder %s65, %s68
    %p74 = scmp.eq.s32.totalorder %s8, 0
    %p75 = por %p73, %p74
    %p76 = scmp.ne.s32.totalorder %s65, %s68
    %p77 = scmp.eq.s32.totalorder %s13, 1
    %p78 = por %p76, %p77
    %p79 = scmp.ne.s32.totalorder %s68, %s69
    %p80 = scmp.eq.s32.totalorder %s13, 0
    %p81 = por %p79, %p80
    %p82 = scmp.ne.s32.totalorder %s68, %s69
    %p83 = scmp.eq.s32.totalorder %s14, 1
    %p84 = por %p82, %p83
    %p86 = scmp.ne.s32.totalorder %s69, %s85
    %p87 = scmp.eq.s32.totalorder %s14, 0
    %p88 = por %p86, %p87
    %p89 = scmp.le.s32.totalorder 1, %s8
    %p90 = scmp.lt.s32.totalorder %s8, 3
    %p91 = pnand %p89, %p90
    %p92 = pneg %p91
    // Predicated region
    $region9: #{timeseries_forward.2} parent=5 // pred_check
      _
    $region10: #{timeseries_forward.2} parent=5 // pred_check_branch
      %94 = sbr.rel (%p91) target = $region12
    $region11: #{timeseries_forward.2} parent=5 // pred_region
      %s95 = ssub.s32 %s8, 1
      // Predicated region
      $region13: #{timeseries_forward.2} parent=11 // pred_check
        %p96 = pneg %p55
      $region14: #{timeseries_forward.2} parent=11 // pred_check_branch
        %98 = sbr.rel (%p96) target = $region16
      $region15: #{timeseries_forward.2} parent=11 // pred_region
        _
      $region16: #{timeseries_forward.2} parent=11 // pred_fallthru
        _
    $region12: #{timeseries_forward.2} parent=5 // pred_fallthru
      _
    %p99 = scmp.lt.s32.totalorder %s8, 2
    // Predicated region
    $region17: #{timeseries_forward.2} parent=5 // pred_check
      %p100 = pneg %p99
    $region18: #{timeseries_forward.2} parent=5 // pred_check_branch
      %102 = sbr.rel (%p100) target = $region20
    $region19: #{timeseries_forward.2} parent=5 // pred_region
      // Predicated region
      $region21: #{timeseries_forward.2} parent=19 // pred_check
        %p103 = pneg %p28
      $region22: #{timeseries_forward.2} parent=19 // pred_check_branch
        %105 = sbr.rel (%p103) target = $region24
      $region23: #{timeseries_forward.2} parent=19 // pred_region
        %p106 = scmp.lt.s32.totalorder %s8, 1
        %s107 = scalar_select %p106, %s8, 1
        %s108 = smul.addr %s107, 8
        %s109 = scalar_lea.vmem %s0, %s108
      $region24: #{timeseries_forward.2} parent=19 // pred_fallthru
        _
    $region20: #{timeseries_forward.2} parent=5 // pred_fallthru
      _
    %p110 = scmp.le.s32.totalorder 1, %s8
    %p111 = scmp.lt.s32.totalorder %s8, 3
    %p112 = pnand %p110, %p111
    %p113 = pneg %p112
    // Predicated region
    $region25: #{timeseries_forward.2} parent=5 // pred_check
      _
    $region26: #{timeseries_forward.2} parent=5 // pred_check_branch
      %115 = sbr.rel (%p112) target = $region28
    $region27: #{timeseries_forward.2} parent=5 // pred_region
      %s116 = ssub.s32 %s8, 1
      %p117 = scmp.lt.s32.totalorder %s13, 1
      %s118 = scalar_select %p117, %s13, 1
      %s119 = smul.addr %s118, 8
      %s120 = scalar_lea.vmem %s0, %s119
      %p121 = pneg %p34
      %p122 = pneg %p31
      %p123 = pneg %p55
      %p124 = pneg %p52
      %p125 = pneg %p81
      %p126 = pneg %p78
      %p127 = scmp.lt.s32.totalorder %s13, 1
      %s128 = scalar_select %p127, %s13, 1
      %s129 = smul.addr %s128, 2
      %s130 = scalar_lea.vmem %s2, %s129
      %p131 = scmp.lt.s32.totalorder %s13, 1
      %s132 = scalar_select %p131, %s13, 1
      %s133 = smul.addr %s132, 8
      %s134 = scalar_lea.vmem %s0, %s133
      %p135 = scmp.lt.s32.totalorder %s13, 1
      %s136 = scalar_select %p135, %s13, 1
      %s137 = smul.addr %s136, 2
      %s138 = scalar_lea.vmem %s2, %s137
      %v139 = vld [vmem:[%s134] sm:$0xff]
      %v140 = vld [vmem:[%s1] sm:$0xff]
      %v141 = vadd.f32 %v139, %v140
      %vm142 = vcmask 261120
      %v143 = vsel %vm142, %v141, 0.0
      %v144 = vrot.slane %v143, 4
      %v145 = vadd.f32 %v143, %v144
      %v146 = vrot.slane %v145, 2
      %v147 = vadd.f32 %v145, %v146
      %v148 = vrot.slane %v147, 1
      %v149 = vadd.f32 %v147, %v148
      %v150 = vmul.f32 %v141, %v141
      %v151 = vsel %vm142, %v150, 0.0
      %v152 = vrot.slane %v151, 4
      %v153 = vadd.f32 %v151, %v152
      %v154 = vrot.slane %v153, 2
      %v155 = vadd.f32 %v153, %v154
      %v156 = vrot.slane %v155, 1
      %v157 = vadd.f32 %v155, %v156
      %vm158 = vcmask 1040384
      %v159 = vsel %vm158, %v149, %v157
      %vm160 = vcmask 254976
      %161 = vst.msk [vmem:[%s138] sm:$0x3] %vm160, %v159
      %p162 = scmp.lt.s32.totalorder %s13, 1
      %s163 = scalar_select %p162, %s13, 1
      %s164 = smul.addr %s163, 2
      %s165 = scalar_lea.vmem %s2, %s164
      // Predicated region
      $region29: #{timeseries_forward.2} parent=27 // pred_check
        %p166 = pneg %p78
      $region30: #{timeseries_forward.2} parent=27 // pred_check_branch
        %168 = sbr.rel (%p166) target = $region32
      $region31: #{timeseries_forward.2} parent=27 // pred_region
        _
      $region32: #{timeseries_forward.2} parent=27 // pred_fallthru
        _
    $region28: #{timeseries_forward.2} parent=5 // pred_fallthru
      _
    %p169 = scmp.le.s32.totalorder 2, %s8
    // Predicated region
    $region33: #{timeseries_forward.2} parent=5 // pred_check
      %p170 = pneg %p169
    $region34: #{timeseries_forward.2} parent=5 // pred_check_branch
      %172 = sbr.rel (%p170) target = $region36
    $region35: #{timeseries_forward.2} parent=5 // pred_region
      %s173 = ssub.s32 %s8, 2
      // Predicated region
      $region37: #{timeseries_forward.2} parent=35 // pred_check
        %p174 = pneg %p84
      $region38: #{timeseries_forward.2} parent=35 // pred_check_branch
        %176 = sbr.rel (%p174) target = $region40
      $region39: #{timeseries_forward.2} parent=35 // pred_region
        %p177 = scmp.lt.s32.totalorder %s14, 1
        %s178 = scalar_select %p177, %s14, 1
        %s179 = smul.addr %s178, 2
        %s180 = scalar_lea.vmem %s2, %s179
      $region40: #{timeseries_forward.2} parent=35 // pred_fallthru
        _
    $region36: #{timeseries_forward.2} parent=5 // pred_fallthru
      _
  $region6: #{timeseries_forward.2} parent=0 // loop_footer
    %s12 = sadd.s32 1, %s8
  $region7: #{timeseries_forward.2} parent=0 // loop_footer_branch
    %7 = sbr.rel target = $region3
  $region8: #{timeseries_forward.2} parent=0 // loop_exit
    _

// kernel: timeseries_forward.3
$region0: #{timeseries_forward.3}
  #allocation0 [shape = 'u32[]', space=smem, size = 0x4, offset = 0x4, fixed_abs, tag = 'smem constant byte address 0x4 - core index']
  #allocation1 [shape = 'u32[144,128]{1,0:T(1,128)}', space=vmem, size = 0x12000, scoped, tag = 'internal scratch']
  %s0 = inlined_call_operand.vmem [shape: f32[2,8,32], index: 0, kind: input, shape index: {}]
  %s1 = inlined_call_operand.vmem [shape: f32[1,8,32], index: 1, kind: input, shape index: {}]
  %s2 = inlined_call_operand.vmem [shape: f32[1,32], index: 2, kind: input, shape index: {}]
  %s3 = inlined_call_operand.vmem [shape: f32[1,32], index: 3, kind: input, shape index: {}]
  %s4 = inlined_call_operand.vmem [shape: bf16[32,96], index: 4, kind: input, shape index: {}]
  %s5 = inlined_call_operand.vmem [shape: bf16[32,32], index: 5, kind: input, shape index: {}]
  %s6 = inlined_call_operand.vmem [shape: f32[1,32], index: 6, kind: input, shape index: {}]
  %s7 = inlined_call_operand.vmem [shape: f32[2,1,32], index: 7, kind: output, shape index: {0}]
  %s8 = inlined_call_operand.vmem [shape: f32[2,2,32], index: 8, kind: output, shape index: {1}]
  %9 = xla_tuple %s7, %s8
  %s10 = sld [smem:[#allocation0]]
  $region69: #{timeseries_forward.3} parent=0
    _
  %s12 = ssub.s32 1, %s10
  %s13 = scalar_select 0, %s12, %s10
  loop: start=0, step=1, limit=4
  $region2: #{timeseries_forward.3} parent=0 // loop_pre_header
    _
  $region3: #{timeseries_forward.3} parent=0 // loop_header
    %s15 = sphi 0, %s19
    %p16 = scmp.ge.s32.totalorder %s15, 4
    %s25 = sphi 0, %s27
    %s28 = sphi 0, %s25
    %s29 = sphi 0, %s28
    %s45 = sphi 0, %s29
    %s49 = sphi 0, %s49
    %s51 = sphi 0, %s49
    %s52 = sphi 0, %s51
    %s66 = sphi 0, %s52
    %s70 = sphi 0, %s70
    %s72 = sphi 0, %s70
    %s73 = sphi 0, %s72
    %s87 = sphi 0, %s73
    %s91 = sphi 0, %s91
    %s93 = sphi 0, %s91
    %s94 = sphi 0, %s93
    %s108 = sphi 0, %s94
    %s112 = sphi 0, %s112
    %s114 = sphi 0, %s112
    %s115 = sphi 0, %s114
    %s129 = sphi 0, %s115
    %s133 = sphi 0, %s133
    %s135 = sphi 0, %s133
    %s136 = sphi 0, %s135
    %s150 = sphi 0, %s136
    %s154 = sphi 0, %s154
    %s156 = sphi 0, %s154
    %s157 = sphi 0, %s156
    %s171 = sphi 0, %s157
    %s177 = sphi 0, %s179
    %s180 = sphi 0, %s177
    %s181 = sphi 0, %s180
    %s197 = sphi 0, %s181
    %s203 = sphi 0, %s205
    %s206 = sphi 0, %s203
    %s207 = sphi 0, %s206
    %s223 = sphi 0, %s207
  $region4: #{timeseries_forward.3} parent=0 // loop_header_branch
    %18 = sbr.rel (%p16) target = $region8
  $region5: #{timeseries_forward.3} parent=0 // loop_body
    %s20 = ssub.s32 %s15, 1
    %s21 = ssub.s32 %s15, 2
    %s22 = sadd.s32 %s15, 1
    %s23 = ssub.s32 %s15, %s22
    %p24 = scmp.eq.s32.totalorder %s23, 0
    %s26 = sadd.s32 %s25, 1
    %s27 = scalar_select %p24, %s25, %s26
    %p30 = pneg %p24
    %p31 = scmp.eq.s32.totalorder %s15, 1
    %p32 = por %p30, %p31
    %p33 = scmp.ne.s32.totalorder %s25, %s28
    %p34 = scmp.eq.s32.totalorder %s15, 0
    %p35 = por %p33, %p34
    %p36 = scmp.ne.s32.totalorder %s25, %s28
    %p37 = scmp.eq.s32.totalorder %s20, 1
    %p38 = por %p36, %p37
    %p39 = scmp.ne.s32.totalorder %s28, %s29
    %p40 = scmp.eq.s32.totalorder %s20, 0
    %p41 = por %p39, %p40
    %p42 = scmp.ne.s32.totalorder %s28, %s29
    %p43 = scmp.eq.s32.totalorder %s21, 1
    %p44 = por %p42, %p43
    %p46 = scmp.ne.s32.totalorder %s29, %s45
    %p47 = scmp.eq.s32.totalorder %s21, 0
    %p48 = por %p46, %p47
    %s50 = sadd.s32 %s49, 1
    %p53 = scmp.eq.s32.totalorder %s15, 1
    %p54 = scmp.ne.s32.totalorder %s49, %s51
    %p55 = scmp.eq.s32.totalorder %s15, 0
    %p56 = por %p54, %p55
    %p57 = scmp.ne.s32.totalorder %s49, %s51
    %p58 = scmp.eq.s32.totalorder %s20, 1
    %p59 = por %p57, %p58
    %p60 = scmp.ne.s32.totalorder %s51, %s52
    %p61 = scmp.eq.s32.totalorder %s20, 0
    %p62 = por %p60, %p61
    %p63 = scmp.ne.s32.totalorder %s51, %s52
    %p64 = scmp.eq.s32.totalorder %s21, 1
    %p65 = por %p63, %p64
    %p67 = scmp.ne.s32.totalorder %s52, %s66
    %p68 = scmp.eq.s32.totalorder %s21, 0
    %p69 = por %p67, %p68
    %s71 = sadd.s32 %s70, 1
    %p74 = scmp.eq.s32.totalorder %s15, 1
    %p75 = scmp.ne.s32.totalorder %s70, %s72
    %p76 = scmp.eq.s32.totalorder %s15, 0
    %p77 = por %p75, %p76
    %p78 = scmp.ne.s32.totalorder %s70, %s72
    %p79 = scmp.eq.s32.totalorder %s20, 1
    %p80 = por %p78, %p79
    %p81 = scmp.ne.s32.totalorder %s72, %s73
    %p82 = scmp.eq.s32.totalorder %s20, 0
    %p83 = por %p81, %p82
    %p84 = scmp.ne.s32.totalorder %s72, %s73
    %p85 = scmp.eq.s32.totalorder %s21, 1
    %p86 = por %p84, %p85
    %p88 = scmp.ne.s32.totalorder %s73, %s87
    %p89 = scmp.eq.s32.totalorder %s21, 0
    %p90 = por %p88, %p89
    %s92 = sadd.s32 %s91, 1
    %p95 = scmp.eq.s32.totalorder %s15, 1
    %p96 = scmp.ne.s32.totalorder %s91, %s93
    %p97 = scmp.eq.s32.totalorder %s15, 0
    %p98 = por %p96, %p97
    %p99 = scmp.ne.s32.totalorder %s91, %s93
    %p100 = scmp.eq.s32.totalorder %s20, 1
    %p101 = por %p99, %p100
    %p102 = scmp.ne.s32.totalorder %s93, %s94
    %p103 = scmp.eq.s32.totalorder %s20, 0
    %p104 = por %p102, %p103
    %p105 = scmp.ne.s32.totalorder %s93, %s94
    %p106 = scmp.eq.s32.totalorder %s21, 1
    %p107 = por %p105, %p106
    %p109 = scmp.ne.s32.totalorder %s94, %s108
    %p110 = scmp.eq.s32.totalorder %s21, 0
    %p111 = por %p109, %p110
    %s113 = sadd.s32 %s112, 1
    %p116 = scmp.eq.s32.totalorder %s15, 1
    %p117 = scmp.ne.s32.totalorder %s112, %s114
    %p118 = scmp.eq.s32.totalorder %s15, 0
    %p119 = por %p117, %p118
    %p120 = scmp.ne.s32.totalorder %s112, %s114
    %p121 = scmp.eq.s32.totalorder %s20, 1
    %p122 = por %p120, %p121
    %p123 = scmp.ne.s32.totalorder %s114, %s115
    %p124 = scmp.eq.s32.totalorder %s20, 0
    %p125 = por %p123, %p124
    %p126 = scmp.ne.s32.totalorder %s114, %s115
    %p127 = scmp.eq.s32.totalorder %s21, 1
    %p128 = por %p126, %p127
    %p130 = scmp.ne.s32.totalorder %s115, %s129
    %p131 = scmp.eq.s32.totalorder %s21, 0
    %p132 = por %p130, %p131
    %s134 = sadd.s32 %s133, 1
    %p137 = scmp.eq.s32.totalorder %s15, 1
    %p138 = scmp.ne.s32.totalorder %s133, %s135
    %p139 = scmp.eq.s32.totalorder %s15, 0
    %p140 = por %p138, %p139
    %p141 = scmp.ne.s32.totalorder %s133, %s135
    %p142 = scmp.eq.s32.totalorder %s20, 1
    %p143 = por %p141, %p142
    %p144 = scmp.ne.s32.totalorder %s135, %s136
    %p145 = scmp.eq.s32.totalorder %s20, 0
    %p146 = por %p144, %p145
    %p147 = scmp.ne.s32.totalorder %s135, %s136
    %p148 = scmp.eq.s32.totalorder %s21, 1
    %p149 = por %p147, %p148
    %p151 = scmp.ne.s32.totalorder %s136, %s150
    %p152 = scmp.eq.s32.totalorder %s21, 0
    %p153 = por %p151, %p152
    %s155 = sadd.s32 %s154, 1
    %p158 = scmp.eq.s32.totalorder %s15, 1
    %p159 = scmp.ne.s32.totalorder %s154, %s156
    %p160 = scmp.eq.s32.totalorder %s15, 0
    %p161 = por %p159, %p160
    %p162 = scmp.ne.s32.totalorder %s154, %s156
    %p163 = scmp.eq.s32.totalorder %s20, 1
    %p164 = por %p162, %p163
    %p165 = scmp.ne.s32.totalorder %s156, %s157
    %p166 = scmp.eq.s32.totalorder %s20, 0
    %p167 = por %p165, %p166
    %p168 = scmp.ne.s32.totalorder %s156, %s157
    %p169 = scmp.eq.s32.totalorder %s21, 1
    %p170 = por %p168, %p169
    %p172 = scmp.ne.s32.totalorder %s157, %s171
    %p173 = scmp.eq.s32.totalorder %s21, 0
    %p174 = por %p172, %p173
    %s175 = ssub.s32 %s15, %s22
    %p176 = scmp.eq.s32.totalorder %s175, 0
    %s178 = sadd.s32 %s177, 1
    %s179 = scalar_select %p176, %s177, %s178
    %p182 = pneg %p176
    %p183 = scmp.eq.s32.totalorder %s15, 1
    %p184 = por %p182, %p183
    %p185 = scmp.ne.s32.totalorder %s177, %s180
    %p186 = scmp.eq.s32.totalorder %s15, 0
    %p187 = por %p185, %p186
    %p188 = scmp.ne.s32.totalorder %s177, %s180
    %p189 = scmp.eq.s32.totalorder %s20, 1
    %p190 = por %p188, %p189
    %p191 = scmp.ne.s32.totalorder %s180, %s181
    %p192 = scmp.eq.s32.totalorder %s20, 0
    %p193 = por %p191, %p192
    %p194 = scmp.ne.s32.totalorder %s180, %s181
    %p195 = scmp.eq.s32.totalorder %s21, 1
    %p196 = por %p194, %p195
    %p198 = scmp.ne.s32.totalorder %s181, %s197
    %p199 = scmp.eq.s32.totalorder %s21, 0
    %p200 = por %p198, %p199
    %s201 = ssub.s32 %s15, %s22
    %p202 = scmp.eq.s32.totalorder %s201, 0
    %s204 = sadd.s32 %s203, 1
    %s205 = scalar_select %p202, %s203, %s204
    %p208 = pneg %p202
    %p209 = scmp.eq.s32.totalorder %s15, 1
    %p210 = por %p208, %p209
    %p211 = scmp.ne.s32.totalorder %s203, %s206
    %p212 = scmp.eq.s32.totalorder %s15, 0
    %p213 = por %p211, %p212
    %p214 = scmp.ne.s32.totalorder %s203, %s206
    %p215 = scmp.eq.s32.totalorder %s20, 1
    %p216 = por %p214, %p215
    %p217 = scmp.ne.s32.totalorder %s206, %s207
    %p218 = scmp.eq.s32.totalorder %s20, 0
    %p219 = por %p217, %p218
    %p220 = scmp.ne.s32.totalorder %s206, %s207
    %p221 = scmp.eq.s32.totalorder %s21, 1
    %p222 = por %p220, %p221
    %p224 = scmp.ne.s32.totalorder %s207, %s223
    %p225 = scmp.eq.s32.totalorder %s21, 0
    %p226 = por %p224, %p225
    %p227 = scmp.le.s32.totalorder 1, %s15
    %p228 = scmp.lt.s32.totalorder %s15, 3
    %p229 = pnand %p227, %p228
    %p230 = pneg %p229
    // Predicated region
    $region9: #{timeseries_forward.3} parent=5 // pred_check
      _
    $region10: #{timeseries_forward.3} parent=5 // pred_check_branch
      %232 = sbr.rel (%p229) target = $region12
    $region11: #{timeseries_forward.3} parent=5 // pred_region
      %s233 = ssub.s32 %s15, 1
      // Predicated region
      $region13: #{timeseries_forward.3} parent=11 // pred_check
        %p234 = pneg %p62
      $region14: #{timeseries_forward.3} parent=11 // pred_check_branch
        %236 = sbr.rel (%p234) target = $region16
      $region15: #{timeseries_forward.3} parent=11 // pred_region
        _
      $region16: #{timeseries_forward.3} parent=11 // pred_fallthru
        _
      // Predicated region
      $region17: #{timeseries_forward.3} parent=11 // pred_check
        %p237 = pneg %p83
      $region18: #{timeseries_forward.3} parent=11 // pred_check_branch
        %239 = sbr.rel (%p237) target = $region20
      $region19: #{timeseries_forward.3} parent=11 // pred_region
        _
      $region20: #{timeseries_forward.3} parent=11 // pred_fallthru
        _
      // Predicated region
      $region21: #{timeseries_forward.3} parent=11 // pred_check
        %p240 = pneg %p104
      $region22: #{timeseries_forward.3} parent=11 // pred_check_branch
        %242 = sbr.rel (%p240) target = $region24
      $region23: #{timeseries_forward.3} parent=11 // pred_region
        _
      $region24: #{timeseries_forward.3} parent=11 // pred_fallthru
        _
      // Predicated region
      $region25: #{timeseries_forward.3} parent=11 // pred_check
        %p243 = pneg %p125
      $region26: #{timeseries_forward.3} parent=11 // pred_check_branch
        %245 = sbr.rel (%p243) target = $region28
      $region27: #{timeseries_forward.3} parent=11 // pred_region
        _
      $region28: #{timeseries_forward.3} parent=11 // pred_fallthru
        _
      // Predicated region
      $region29: #{timeseries_forward.3} parent=11 // pred_check
        %p246 = pneg %p146
      $region30: #{timeseries_forward.3} parent=11 // pred_check_branch
        %248 = sbr.rel (%p246) target = $region32
      $region31: #{timeseries_forward.3} parent=11 // pred_region
        _
      $region32: #{timeseries_forward.3} parent=11 // pred_fallthru
        _
      // Predicated region
      $region33: #{timeseries_forward.3} parent=11 // pred_check
        %p249 = pneg %p167
      $region34: #{timeseries_forward.3} parent=11 // pred_check_branch
        %251 = sbr.rel (%p249) target = $region36
      $region35: #{timeseries_forward.3} parent=11 // pred_region
        _
      $region36: #{timeseries_forward.3} parent=11 // pred_fallthru
        _
    $region12: #{timeseries_forward.3} parent=5 // pred_fallthru
      _
    %p252 = scmp.lt.s32.totalorder %s15, 2
    // Predicated region
    $region37: #{timeseries_forward.3} parent=5 // pred_check
      %p253 = pneg %p252
    $region38: #{timeseries_forward.3} parent=5 // pred_check_branch
      %255 = sbr.rel (%p253) target = $region40
    $region39: #{timeseries_forward.3} parent=5 // pred_region
      // Predicated region
      $region41: #{timeseries_forward.3} parent=39 // pred_check
        %p256 = pneg %p35
      $region42: #{timeseries_forward.3} parent=39 // pred_check_branch
        %258 = sbr.rel (%p256) target = $region44
      $region43: #{timeseries_forward.3} parent=39 // pred_region
        %p259 = scmp.lt.s32.totalorder %s15, 1
        %s260 = scalar_select %p259, %s15, 1
        %s261 = smul.addr %s260, 8
        %s262 = scalar_lea.vmem %s0, %s261
      $region44: #{timeseries_forward.3} parent=39 // pred_fallthru
        _
    $region40: #{timeseries_forward.3} parent=5 // pred_fallthru
      _
    %p263 = scmp.le.s32.totalorder 1, %s15
    %p264 = scmp.lt.s32.totalorder %s15, 3
    %p265 = pnand %p263, %p264
    %p266 = pneg %p265
    // Predicated region
    $region45: #{timeseries_forward.3} parent=5 // pred_check
      _
    $region46: #{timeseries_forward.3} parent=5 // pred_check_branch
      %268 = sbr.rel (%p265) target = $region48
    $region47: #{timeseries_forward.3} parent=5 // pred_region
      %s269 = ssub.s32 %s15, 1
      %p270 = scmp.lt.s32.totalorder %s20, 1
      %s271 = scalar_select %p270, %s20, 1
      %s272 = smul.addr %s271, 8
      %s273 = scalar_lea.vmem %s0, %s272
      %p274 = pneg %p41
      %p275 = pneg %p38
      %p276 = pneg %p62
      %p277 = pneg %p59
      %p278 = pneg %p83
      %p279 = pneg %p80
      %p280 = pneg %p104
      %p281 = pneg %p101
      %p282 = pneg %p125
      %p283 = pneg %p122
      %p284 = pneg %p146
      %p285 = pneg %p143
      %p286 = pneg %p167
      %p287 = pneg %p164
      %p288 = pneg %p193
      %p289 = pneg %p190
      %p290 = scmp.lt.s32.totalorder %s20, 1
      %s291 = scalar_select %p290, %s20, 1
      %s292 = scalar_lea.vmem %s7, %s291
      %p293 = pneg %p219
      %p294 = pneg %p216
      %p295 = scmp.lt.s32.totalorder %s20, 1
      %s296 = scalar_select %p295, %s20, 1
      %s297 = smul.addr %s296, 2
      %s298 = scalar_lea.vmem %s8, %s297
      %p299 = scmp.lt.s32.totalorder %s20, 1
      %s300 = scalar_select %p299, %s20, 1
      %s301 = smul.addr %s300, 8
      %s302 = scalar_lea.vmem %s0, %s301
      %p303 = scmp.lt.s32.totalorder %s20, 1
      %s304 = scalar_select %p303, %s20, 1
      %s305 = scalar_lea.vmem %s7, %s304
      %p306 = scmp.lt.s32.totalorder %s20, 1
      %s307 = scalar_select %p306, %s20, 1
      %s308 = smul.addr %s307, 2
      %s309 = scalar_lea.vmem %s8, %s308
      %v311 = vld [vmem:[%s302] sm:$0xff]
      %v312 = vld [vmem:[%s1] sm:$0xff]
      %v313 = vadd.f32 %v311, %v312
      %v314 = vld [vmem:[%s2] sm:$0x1]
      %v316 = vlaneseq
      %v317 = vshrl.u32 %v316, 7
      %v318 = vsub.s32 0, %v317
      %v319 = vrot.slane %v314, %v318
      %v321 = vmul.f32 %v313, %v319
      %v322 = vld [vmem:[%s3] sm:$0x1]
      %v324 = vlaneseq
      %v325 = vshrl.u32 %v324, 7
      %v326 = vsub.s32 0, %v325
      %v327 = vrot.slane %v322, %v326
      %v329 = vadd.f32 %v321, %v327
      %v330 = vpack.c.bf16 %v329, %v329
      %v331 = vld [vmem:[%s4] sm:$0xf]
      %v332 = vld [vmem:[%s4 + $0x4] sm:$0xf]
      %v333 = vld [vmem:[%s4 + $0x8] sm:$0xf]
      %v334 = vld [vmem:[%s4 + $0xc] sm:$0xf]
      %v339 = vunpack.c.l.b16 %v331
      %v340 = vunpack.c.l.b16 %v332
      %v341 = vunpack.c.l.b16 %v333
      %v342 = vunpack.c.l.b16 %v334
      %v343 = vpack.c.b16 %v340, %v339
      %v344 = vpack.c.b16 %v342, %v341
      %vm347 = vcmask 261120
      %v349 = vsel %vm347, %v330, 0
      %351 = vmatprep.subr.bf16.mxu0 0
      %352 = vmatpush1.bf16.msra.mxu0 0
      %353 = vmatprep.subr.bf16.mxu0 0
      %354 = vmatpush1.bf16.msra.mxu0 0
      %355 = vmatprep.subr.bf16.mxu0 0
      %356 = vmatpush1.bf16.msra.mxu0 0
      %357 = vmatprep.subr.bf16.mxu0 0
      %358 = vmatpush1.bf16.msra.mxu0 0
      %359 = vmatprep.subr.bf16.mxu0 0
      %360 = vmatpush1.bf16.msra.mxu0 0
      %361 = vmatprep.subr.bf16.mxu0 0
      %362 = vmatpush1.bf16.msra.mxu0 0
      %363 = vmatprep.subr.bf16.mxu0 0
      %364 = vmatpush1.bf16.msra.mxu0 %v344
      %365 = vmatprep.subr.bf16.mxu0 0
      %366 = vmatpush1.bf16.msra.mxu0 %v343
      %367 = vmatprep.subr.bf16.mxu0 0
      %368 = vmatpush2.bf16.msra.mxu0 0
      %369 = vmatprep.subr.bf16.mxu0 0
      %370 = vmatpush2.bf16.msra.mxu0 0
      %371 = vmatprep.subr.bf16.mxu0 0
      %372 = vmatpush2.bf16.msra.mxu0 0
      %373 = vmatprep.subr.bf16.mxu0 0
      %374 = vmatpush2.bf16.msra.mxu0 0
      %375 = vmatprep.subr.bf16.mxu0 0
      %376 = vmatpush2.bf16.msra.mxu0 0
      %377 = vmatprep.subr.bf16.mxu0 0
      %378 = vmatpush2.bf16.msra.mxu0 0
      %379 = vmatprep.subr.bf16.mxu0 0
      %380 = vmatpush2.bf16.msra.mxu0 0
      %381 = vmatprep.subr.bf16.mxu0 0
      %382 = vmatpush2.bf16.msra.mxu0 0
      %383 = vmatprep.mubr.bf16.mxu0 0
      %384 = vmatmul.mubr.bf16.gmra.mxu0 %v349
      %v385 = vpop.f32.mrf.mxu0
      %v386 = vadd.f32 0.0, %v385
      %v387 = vpop.f32.mrf.mxu0
      %v388 = vpop.f32.mrf.mxu0
      %v389 = vpop.f32.mrf.mxu0
      %390 = vdwg.mxu0
      %v391 = vpack.c.bf16 %v386, %v386
      %393 = vrot.lane.b32.xlu0 %v391, 96
      %v394 = vpop.permute.xlu0 %393
      %vm395 = vcmask 64512
      %v397 = vsel %vm395, %v391, 0
      %v400 = vsel %vm395, %v394, 0
      %402 = vmatprep.subr.bf16.mxu0 0
      %403 = vmatpush1.bf16.xpose.msra.mxu0 0
      %404 = vmatprep.subr.bf16.mxu0 0
      %405 = vmatpush1.bf16.xpose.msra.mxu0 0
      %406 = vmatprep.subr.bf16.mxu0 0
      %407 = vmatpush1.bf16.xpose.msra.mxu0 0
      %408 = vmatprep.subr.bf16.mxu0 0
      %409 = vmatpush1.bf16.xpose.msra.mxu0 0
      %410 = vmatprep.subr.bf16.mxu0 0
      %411 = vmatpush1.bf16.xpose.msra.mxu0 0
      %412 = vmatprep.subr.bf16.mxu0 0
      %413 = vmatpush1.bf16.xpose.msra.mxu0 0
      %414 = vmatprep.subr.bf16.mxu0 0
      %415 = vmatpush1.bf16.xpose.msra.mxu0 0
      %416 = vmatprep.subr.bf16.mxu0 0
      %417 = vmatpush1.bf16.xpose.msra.mxu0 %v400
      %418 = vmatprep.subr.bf16.mxu0 0
      %419 = vmatpush2.bf16.xpose.msra.mxu0 0
      %420 = vmatprep.subr.bf16.mxu0 0
      %421 = vmatpush2.bf16.xpose.msra.mxu0 0
      %422 = vmatprep.subr.bf16.mxu0 0
      %423 = vmatpush2.bf16.xpose.msra.mxu0 0
      %424 = vmatprep.subr.bf16.mxu0 0
      %425 = vmatpush2.bf16.xpose.msra.mxu0 0
      %426 = vmatprep.subr.bf16.mxu0 0
      %427 = vmatpush2.bf16.xpose.msra.mxu0 0
      %428 = vmatprep.subr.bf16.mxu0 0
      %429 = vmatpush2.bf16.xpose.msra.mxu0 0
      %430 = vmatprep.subr.bf16.mxu0 0
      %431 = vmatpush2.bf16.xpose.msra.mxu0 0
      %432 = vmatprep.subr.bf16.mxu0 0
      %433 = vmatpush2.bf16.xpose.msra.mxu0 0
      %434 = vmatprep.mubr.bf16.mxu0 0
      %435 = vmatmul.mubr.bf16.gmra.mxu0 %v397
      %v436 = vpop.f32.mrf.mxu0
      %v437 = vadd.f32 0.0, %v436
      %v438 = vpop.f32.mrf.mxu0
      %v439 = vpop.f32.mrf.mxu0
      %v440 = vpop.f32.mrf.mxu0
      %441 = vdwg.mxu0
      %v442 = vmul.f32 %v437, 0.17677669
      %v443 = vsel %vm395, %v442, -inf
      %444 = vmax.xlane.f32.xlu0 %v443
      %v445 = vpop.xlane.xlu0 %444
      %v446 = vsub.f32 %v442, %v445
      %v447 = vmul.f32 %v446, 1.442695
      %v448 = vpow.pop %v447
      %v449 = vsel %vm395, %v448, 0.0
      %450 = vadd.xlane.f32.xlu0 %v449
      %v451 = vpop.xlane.xlu0 %450
      %v452 = vrcp.pop %v451
      %v453 = vmul.f32 %v448, %v452
      %v454 = vpack.c.bf16 %v453, %v453
      %455 = vrot.lane.b32.xlu0 %v391, 64
      %v456 = vpop.permute.xlu0 %455
      %v458 = vsel %vm395, %v454, 0
      %vm460 = vcmask 1043456
      %v462 = vsel %vm460, %v456, 0
      %464 = vmatprep.subr.bf16.mxu0 0
      %465 = vmatpush1.bf16.msra.mxu0 0
      %466 = vmatprep.subr.bf16.mxu0 0
      %467 = vmatpush1.bf16.msra.mxu0 0
      %468 = vmatprep.subr.bf16.mxu0 0
      %469 = vmatpush1.bf16.msra.mxu0 0
      %470 = vmatprep.subr.bf16.mxu0 0
      %471 = vmatpush1.bf16.msra.mxu0 0
      %472 = vmatprep.subr.bf16.mxu0 0
      %473 = vmatpush1.bf16.msra.mxu0 0
      %474 = vmatprep.subr.bf16.mxu0 0
      %475 = vmatpush1.bf16.msra.mxu0 0
      %476 = vmatprep.subr.bf16.mxu0 0
      %477 = vmatpush1.bf16.msra.mxu0 0
      %478 = vmatprep.subr.bf16.mxu0 0
      %479 = vmatpush1.bf16.msra.mxu0 %v462
      %480 = vmatprep.subr.bf16.mxu0 0
      %481 = vmatpush2.bf16.msra.mxu0 0
      %482 = vmatprep.subr.bf16.mxu0 0
      %483 = vmatpush2.bf16.msra.mxu0 0
      %484 = vmatprep.subr.bf16.mxu0 0
      %485 = vmatpush2.bf16.msra.mxu0 0
      %486 = vmatprep.subr.bf16.mxu0 0
      %487 = vmatpush2.bf16.msra.mxu0 0
      %488 = vmatprep.subr.bf16.mxu0 0
      %489 = vmatpush2.bf16.msra.mxu0 0
      %490 = vmatprep.subr.bf16.mxu0 0
      %491 = vmatpush2.bf16.msra.mxu0 0
      %492 = vmatprep.subr.bf16.mxu0 0
      %493 = vmatpush2.bf16.msra.mxu0 0
      %494 = vmatprep.subr.bf16.mxu0 0
      %495 = vmatpush2.bf16.msra.mxu0 0
      %496 = vmatprep.mubr.bf16.mxu0 0
      %497 = vmatmul.mubr.bf16.gmra.mxu0 %v458
      %v498 = vpop.f32.mrf.mxu0
      %v499 = vadd.f32 0.0, %v498
      %v500 = vpop.f32.mrf.mxu0
      %v501 = vpop.f32.mrf.mxu0
      %v502 = vpop.f32.mrf.mxu0
      %503 = vdwg.mxu0
      %504 = vrot.lane.b32.xlu0 %v391, 120
      %v505 = vpop.permute.xlu0 %504
      %506 = vrot.lane.b32.xlu0 %v391, 88
      %v507 = vpop.permute.xlu0 %506
      %v509 = vsel %vm395, %v505, 0
      %v512 = vsel %vm395, %v507, 0
      %514 = vmatprep.subr.bf16.mxu0 0
      %515 = vmatpush1.bf16.xpose.msra.mxu0 0
      %516 = vmatprep.subr.bf16.mxu0 0
      %517 = vmatpush1.bf16.xpose.msra.mxu0 0
      %518 = vmatprep.subr.bf16.mxu0 0
      %519 = vmatpush1.bf16.xpose.msra.mxu0 0
      %520 = vmatprep.subr.bf16.mxu0 0
      %521 = vmatpush1.bf16.xpose.msra.mxu0 0
      %522 = vmatprep.subr.bf16.mxu0 0
      %523 = vmatpush1.bf16.xpose.msra.mxu0 0
      %524 = vmatprep.subr.bf16.mxu0 0
      %525 = vmatpush1.bf16.xpose.msra.mxu0 0
      %526 = vmatprep.subr.bf16.mxu0 0
      %527 = vmatpush1.bf16.xpose.msra.mxu0 0
      %528 = vmatprep.subr.bf16.mxu0 0
      %529 = vmatpush1.bf16.xpose.msra.mxu0 %v512
      %530 = vmatprep.subr.bf16.mxu0 0
      %531 = vmatpush2.bf16.xpose.msra.mxu0 0
      %532 = vmatprep.subr.bf16.mxu0 0
      %533 = vmatpush2.bf16.xpose.msra.mxu0 0
      %534 = vmatprep.subr.bf16.mxu0 0
      %535 = vmatpush2.bf16.xpose.msra.mxu0 0
      %536 = vmatprep.subr.bf16.mxu0 0
      %537 = vmatpush2.bf16.xpose.msra.mxu0 0
      %538 = vmatprep.subr.bf16.mxu0 0
      %539 = vmatpush2.bf16.xpose.msra.mxu0 0
      %540 = vmatprep.subr.bf16.mxu0 0
      %541 = vmatpush2.bf16.xpose.msra.mxu0 0
      %542 = vmatprep.subr.bf16.mxu0 0
      %543 = vmatpush2.bf16.xpose.msra.mxu0 0
      %544 = vmatprep.subr.bf16.mxu0 0
      %545 = vmatpush2.bf16.xpose.msra.mxu0 0
      %546 = vmatprep.mubr.bf16.mxu0 0
      %547 = vmatmul.mubr.bf16.gmra.mxu0 %v509
      %v548 = vpop.f32.mrf.mxu0
      %v549 = vadd.f32 0.0, %v548
      %v550 = vpop.f32.mrf.mxu0
      %v551 = vpop.f32.mrf.mxu0
      %v552 = vpop.f32.mrf.mxu0
      %553 = vdwg.mxu0
      %v554 = vmul.f32 %v549, 0.17677669
      %v555 = vsel %vm395, %v554, -inf
      %556 = vmax.xlane.f32.xlu0 %v555
      %v557 = vpop.xlane.xlu0 %556
      %v558 = vsub.f32 %v554, %v557
      %v559 = vmul.f32 %v558, 1.442695
      %v560 = vpow.pop %v559
      %v561 = vsel %vm395, %v560, 0.0
      %562 = vadd.xlane.f32.xlu0 %v561
      %v563 = vpop.xlane.xlu0 %562
      %v564 = vrcp.pop %v563
      %v565 = vmul.f32 %v560, %v564
      %v566 = vpack.c.bf16 %v565, %v565
      %567 = vrot.lane.b32.xlu0 %v391, 56
      %v568 = vpop.permute.xlu0 %567
      %v570 = vsel %vm395, %v566, 0
      %v573 = vsel %vm460, %v568, 0
      %575 = vmatprep.subr.bf16.mxu0 0
      %576 = vmatpush1.bf16.msra.mxu0 0
      %577 = vmatprep.subr.bf16.mxu0 0
      %578 = vmatpush1.bf16.msra.mxu0 0
      %579 = vmatprep.subr.bf16.mxu0 0
      %580 = vmatpush1.bf16.msra.mxu0 0
      %581 = vmatprep.subr.bf16.mxu0 0
      %582 = vmatpush1.bf16.msra.mxu0 0
      %583 = vmatprep.subr.bf16.mxu0 0
      %584 = vmatpush1.bf16.msra.mxu0 0
      %585 = vmatprep.subr.bf16.mxu0 0
      %586 = vmatpush1.bf16.msra.mxu0 0
      %587 = vmatprep.subr.bf16.mxu0 0
      %588 = vmatpush1.bf16.msra.mxu0 0
      %589 = vmatprep.subr.bf16.mxu0 0
      %590 = vmatpush1.bf16.msra.mxu0 %v573
      %591 = vmatprep.subr.bf16.mxu0 0
      %592 = vmatpush2.bf16.msra.mxu0 0
      %593 = vmatprep.subr.bf16.mxu0 0
      %594 = vmatpush2.bf16.msra.mxu0 0
      %595 = vmatprep.subr.bf16.mxu0 0
      %596 = vmatpush2.bf16.msra.mxu0 0
      %597 = vmatprep.subr.bf16.mxu0 0
      %598 = vmatpush2.bf16.msra.mxu0 0
      %599 = vmatprep.subr.bf16.mxu0 0
      %600 = vmatpush2.bf16.msra.mxu0 0
      %601 = vmatprep.subr.bf16.mxu0 0
      %602 = vmatpush2.bf16.msra.mxu0 0
      %603 = vmatprep.subr.bf16.mxu0 0
      %604 = vmatpush2.bf16.msra.mxu0 0
      %605 = vmatprep.subr.bf16.mxu0 0
      %606 = vmatpush2.bf16.msra.mxu0 0
      %607 = vmatprep.mubr.bf16.mxu0 0
      %608 = vmatmul.mubr.bf16.gmra.mxu0 %v570
      %v609 = vpop.f32.mrf.mxu0
      %v610 = vadd.f32 0.0, %v609
      %v611 = vpop.f32.mrf.mxu0
      %v612 = vpop.f32.mrf.mxu0
      %v613 = vpop.f32.mrf.mxu0
      %614 = vdwg.mxu0
      %615 = vrot.lane.b32.xlu0 %v391, 112
      %v616 = vpop.permute.xlu0 %615
      %617 = vrot.lane.b32.xlu0 %v391, 80
      %v618 = vpop.permute.xlu0 %617
      %v620 = vsel %vm395, %v616, 0
      %v623 = vsel %vm395, %v618, 0
      %625 = vmatprep.subr.bf16.mxu0 0
      %626 = vmatpush1.bf16.xpose.msra.mxu0 0
      %627 = vmatprep.subr.bf16.mxu0 0
      %628 = vmatpush1.bf16.xpose.msra.mxu0 0
      %629 = vmatprep.subr.bf16.mxu0 0
      %630 = vmatpush1.bf16.xpose.msra.mxu0 0
      %631 = vmatprep.subr.bf16.mxu0 0
      %632 = vmatpush1.bf16.xpose.msra.mxu0 0
      %633 = vmatprep.subr.bf16.mxu0 0
      %634 = vmatpush1.bf16.xpose.msra.mxu0 0
      %635 = vmatprep.subr.bf16.mxu0 0
      %636 = vmatpush1.bf16.xpose.msra.mxu0 0
      %637 = vmatprep.subr.bf16.mxu0 0
      %638 = vmatpush1.bf16.xpose.msra.mxu0 0
      %639 = vmatprep.subr.bf16.mxu0 0
      %640 = vmatpush1.bf16.xpose.msra.mxu0 %v623
      %641 = vmatprep.subr.bf16.mxu0 0
      %642 = vmatpush2.bf16.xpose.msra.mxu0 0
      %643 = vmatprep.subr.bf16.mxu0 0
      %644 = vmatpush2.bf16.xpose.msra.mxu0 0
      %645 = vmatprep.subr.bf16.mxu0 0
      %646 = vmatpush2.bf16.xpose.msra.mxu0 0
      %647 = vmatprep.subr.bf16.mxu0 0
      %648 = vmatpush2.bf16.xpose.msra.mxu0 0
      %649 = vmatprep.subr.bf16.mxu0 0
      %650 = vmatpush2.bf16.xpose.msra.mxu0 0
      %651 = vmatprep.subr.bf16.mxu0 0
      %652 = vmatpush2.bf16.xpose.msra.mxu0 0
      %653 = vmatprep.subr.bf16.mxu0 0
      %654 = vmatpush2.bf16.xpose.msra.mxu0 0
      %655 = vmatprep.subr.bf16.mxu0 0
      %656 = vmatpush2.bf16.xpose.msra.mxu0 0
      %657 = vmatprep.mubr.bf16.mxu0 0
      %658 = vmatmul.mubr.bf16.gmra.mxu0 %v620
      %v659 = vpop.f32.mrf.mxu0
      %v660 = vadd.f32 0.0, %v659
      %v661 = vpop.f32.mrf.mxu0
      %v662 = vpop.f32.mrf.mxu0
      %v663 = vpop.f32.mrf.mxu0
      %664 = vdwg.mxu0
      %v665 = vmul.f32 %v660, 0.17677669
      %v666 = vsel %vm395, %v665, -inf
      %667 = vmax.xlane.f32.xlu0 %v666
      %v668 = vpop.xlane.xlu0 %667
      %v669 = vsub.f32 %v665, %v668
      %v670 = vmul.f32 %v669, 1.442695
      %v671 = vpow.pop %v670
      %v672 = vsel %vm395, %v671, 0.0
      %673 = vadd.xlane.f32.xlu0 %v672
      %v674 = vpop.xlane.xlu0 %673
      %v675 = vrcp.pop %v674
      %v676 = vmul.f32 %v671, %v675
      %v677 = vpack.c.bf16 %v676, %v676
      %678 = vrot.lane.b32.xlu0 %v391, 48
      %v679 = vpop.permute.xlu0 %678
      %v681 = vsel %vm395, %v677, 0
      %v684 = vsel %vm460, %v679, 0
      %686 = vmatprep.subr.bf16.mxu0 0
      %687 = vmatpush1.bf16.msra.mxu0 0
      %688 = vmatprep.subr.bf16.mxu0 0
      %689 = vmatpush1.bf16.msra.mxu0 0
      %690 = vmatprep.subr.bf16.mxu0 0
      %691 = vmatpush1.bf16.msra.mxu0 0
      %692 = vmatprep.subr.bf16.mxu0 0
      %693 = vmatpush1.bf16.msra.mxu0 0
      %694 = vmatprep.subr.bf16.mxu0 0
      %695 = vmatpush1.bf16.msra.mxu0 0
      %696 = vmatprep.subr.bf16.mxu0 0
      %697 = vmatpush1.bf16.msra.mxu0 0
      %698 = vmatprep.subr.bf16.mxu0 0
      %699 = vmatpush1.bf16.msra.mxu0 0
      %700 = vmatprep.subr.bf16.mxu0 0
      %701 = vmatpush1.bf16.msra.mxu0 %v684
      %702 = vmatprep.subr.bf16.mxu0 0
      %703 = vmatpush2.bf16.msra.mxu0 0
      %704 = vmatprep.subr.bf16.mxu0 0
      %705 = vmatpush2.bf16.msra.mxu0 0
      %706 = vmatprep.subr.bf16.mxu0 0
      %707 = vmatpush2.bf16.msra.mxu0 0
      %708 = vmatprep.subr.bf16.mxu0 0
      %709 = vmatpush2.bf16.msra.mxu0 0
      %710 = vmatprep.subr.bf16.mxu0 0
      %711 = vmatpush2.bf16.msra.mxu0 0
      %712 = vmatprep.subr.bf16.mxu0 0
      %713 = vmatpush2.bf16.msra.mxu0 0
      %714 = vmatprep.subr.bf16.mxu0 0
      %715 = vmatpush2.bf16.msra.mxu0 0
      %716 = vmatprep.subr.bf16.mxu0 0
      %717 = vmatpush2.bf16.msra.mxu0 0
      %718 = vmatprep.mubr.bf16.mxu0 0
      %719 = vmatmul.mubr.bf16.gmra.mxu0 %v681
      %v720 = vpop.f32.mrf.mxu0
      %v721 = vadd.f32 0.0, %v720
      %v722 = vpop.f32.mrf.mxu0
      %v723 = vpop.f32.mrf.mxu0
      %v724 = vpop.f32.mrf.mxu0
      %725 = vdwg.mxu0
      %726 = vrot.lane.b32.xlu0 %v391, 104
      %v727 = vpop.permute.xlu0 %726
      %728 = vrot.lane.b32.xlu0 %v391, 72
      %v729 = vpop.permute.xlu0 %728
      %v731 = vsel %vm395, %v727, 0
      %v734 = vsel %vm395, %v729, 0
      %736 = vmatprep.subr.bf16.mxu0 0
      %737 = vmatpush1.bf16.xpose.msra.mxu0 0
      %738 = vmatprep.subr.bf16.mxu0 0
      %739 = vmatpush1.bf16.xpose.msra.mxu0 0
      %740 = vmatprep.subr.bf16.mxu0 0
      %741 = vmatpush1.bf16.xpose.msra.mxu0 0
      %742 = vmatprep.subr.bf16.mxu0 0
      %743 = vmatpush1.bf16.xpose.msra.mxu0 0
      %744 = vmatprep.subr.bf16.mxu0 0
      %745 = vmatpush1.bf16.xpose.msra.mxu0 0
      %746 = vmatprep.subr.bf16.mxu0 0
      %747 = vmatpush1.bf16.xpose.msra.mxu0 0
      %748 = vmatprep.subr.bf16.mxu0 0
      %749 = vmatpush1.bf16.xpose.msra.mxu0 0
      %750 = vmatprep.subr.bf16.mxu0 0
      %751 = vmatpush1.bf16.xpose.msra.mxu0 %v734
      %752 = vmatprep.subr.bf16.mxu0 0
      %753 = vmatpush2.bf16.xpose.msra.mxu0 0
      %754 = vmatprep.subr.bf16.mxu0 0
      %755 = vmatpush2.bf16.xpose.msra.mxu0 0
      %756 = vmatprep.subr.bf16.mxu0 0
      %757 = vmatpush2.bf16.xpose.msra.mxu0 0
      %758 = vmatprep.subr.bf16.mxu0 0
      %759 = vmatpush2.bf16.xpose.msra.mxu0 0
      %760 = vmatprep.subr.bf16.mxu0 0
      %761 = vmatpush2.bf16.xpose.msra.mxu0 0
      %762 = vmatprep.subr.bf16.mxu0 0
      %763 = vmatpush2.bf16.xpose.msra.mxu0 0
      %764 = vmatprep.subr.bf16.mxu0 0
      %765 = vmatpush2.bf16.xpose.msra.mxu0 0
      %766 = vmatprep.subr.bf16.mxu0 0
      %767 = vmatpush2.bf16.xpose.msra.mxu0 0
      %768 = vmatprep.mubr.bf16.mxu0 0
      %769 = vmatmul.mubr.bf16.gmra.mxu0 %v731
      %v770 = vpop.f32.mrf.mxu0
      %v771 = vadd.f32 0.0, %v770
      %v772 = vpop.f32.mrf.mxu0
      %v773 = vpop.f32.mrf.mxu0
      %v774 = vpop.f32.mrf.mxu0
      %775 = vdwg.mxu0
      %v776 = vmul.f32 %v771, 0.17677669
      %v777 = vsel %vm395, %v776, -inf
      %778 = vmax.xlane.f32.xlu0 %v777
      %v779 = vpop.xlane.xlu0 %778
      %v780 = vsub.f32 %v776, %v779
      %v781 = vmul.f32 %v780, 1.442695
      %v782 = vpow.pop %v781
      %v783 = vsel %vm395, %v782, 0.0
      %784 = vadd.xlane.f32.xlu0 %v783
      %v785 = vpop.xlane.xlu0 %784
      %v786 = vrcp.pop %v785
      %v787 = vmul.f32 %v782, %v786
      %v788 = vpack.c.bf16 %v787, %v787
      %789 = vrot.lane.b32.xlu0 %v391, 40
      %v790 = vpop.permute.xlu0 %789
      %v792 = vsel %vm395, %v788, 0
      %v795 = vsel %vm460, %v790, 0
      %797 = vmatprep.subr.bf16.mxu0 0
      %798 = vmatpush1.bf16.msra.mxu0 0
      %799 = vmatprep.subr.bf16.mxu0 0
      %800 = vmatpush1.bf16.msra.mxu0 0
      %801 = vmatprep.subr.bf16.mxu0 0
      %802 = vmatpush1.bf16.msra.mxu0 0
      %803 = vmatprep.subr.bf16.mxu0 0
      %804 = vmatpush1.bf16.msra.mxu0 0
      %805 = vmatprep.subr.bf16.mxu0 0
      %806 = vmatpush1.bf16.msra.mxu0 0
      %807 = vmatprep.subr.bf16.mxu0 0
      %808 = vmatpush1.bf16.msra.mxu0 0
      %809 = vmatprep.subr.bf16.mxu0 0
      %810 = vmatpush1.bf16.msra.mxu0 0
      %811 = vmatprep.subr.bf16.mxu0 0
      %812 = vmatpush1.bf16.msra.mxu0 %v795
      %813 = vmatprep.subr.bf16.mxu0 0
      %814 = vmatpush2.bf16.msra.mxu0 0
      %815 = vmatprep.subr.bf16.mxu0 0
      %816 = vmatpush2.bf16.msra.mxu0 0
      %817 = vmatprep.subr.bf16.mxu0 0
      %818 = vmatpush2.bf16.msra.mxu0 0
      %819 = vmatprep.subr.bf16.mxu0 0
      %820 = vmatpush2.bf16.msra.mxu0 0
      %821 = vmatprep.subr.bf16.mxu0 0
      %822 = vmatpush2.bf16.msra.mxu0 0
      %823 = vmatprep.subr.bf16.mxu0 0
      %824 = vmatpush2.bf16.msra.mxu0 0
      %825 = vmatprep.subr.bf16.mxu0 0
      %826 = vmatpush2.bf16.msra.mxu0 0
      %827 = vmatprep.subr.bf16.mxu0 0
      %828 = vmatpush2.bf16.msra.mxu0 0
      %829 = vmatprep.mubr.bf16.mxu0 0
      %830 = vmatmul.mubr.bf16.gmra.mxu0 %v792
      %v831 = vpop.f32.mrf.mxu0
      %v832 = vadd.f32 0.0, %v831
      %v833 = vpop.f32.mrf.mxu0
      %v834 = vpop.f32.mrf.mxu0
      %v835 = vpop.f32.mrf.mxu0
      %836 = vdwg.mxu0
      %838 = vrot.lane.b32.xlu0 %v610, 8
      %v839 = vpop.permute.xlu0 %838
      %842 = vrot.lane.b32.xlu0 %v721, 16
      %v843 = vpop.permute.xlu0 %842
      %846 = vrot.lane.b32.xlu0 %v832, 24
      %v847 = vpop.permute.xlu0 %846
      %v849 = vsel %vm395, %v499, %v839
      %vm850 = vcmask 130048
      %v851 = vsel %vm850, %v849, %v843
      %vm852 = vcmask 195584
      %v853 = vsel %vm852, %v851, %v847
      %v854 = vpack.c.bf16 %v853, %v853
      %v855 = vld [vmem:[%s5] sm:$0xf]
      %v856 = vld [vmem:[%s5 + $0x4] sm:$0xf]
      %v857 = vld [vmem:[%s5 + $0x8] sm:$0xf]
      %v858 = vld [vmem:[%s5 + $0xc] sm:$0xf]
      %v859 = vld [vmem:[%s6] sm:$0x1]
      %v861 = vlaneseq
      %v862 = vshrl.u32 %v861, 7
      %v863 = vsub.s32 0, %v862
      %v864 = vrot.slane %v859, %v863
      %v870 = vunpack.c.l.b16 %v855
      %v871 = vunpack.c.l.b16 %v856
      %v872 = vunpack.c.l.b16 %v857
      %v873 = vunpack.c.l.b16 %v858
      %v874 = vpack.c.b16 %v871, %v870
      %v875 = vpack.c.b16 %v873, %v872
      %v879 = vsel %vm347, %v854, 0
      %881 = vmatprep.subr.bf16.mxu0 0
      %882 = vmatpush1.bf16.msra.mxu0 0
      %883 = vmatprep.subr.bf16.mxu0 0
      %884 = vmatpush1.bf16.msra.mxu0 0
      %885 = vmatprep.subr.bf16.mxu0 0
      %886 = vmatpush1.bf16.msra.mxu0 0
      %887 = vmatprep.subr.bf16.mxu0 0
      %888 = vmatpush1.bf16.msra.mxu0 0
      %889 = vmatprep.subr.bf16.mxu0 0
      %890 = vmatpush1.bf16.msra.mxu0 0
      %891 = vmatprep.subr.bf16.mxu0 0
      %892 = vmatpush1.bf16.msra.mxu0 0
      %893 = vmatprep.subr.bf16.mxu0 0
      %894 = vmatpush1.bf16.msra.mxu0 %v875
      %895 = vmatprep.subr.bf16.mxu0 0
      %896 = vmatpush1.bf16.msra.mxu0 %v874
      %897 = vmatprep.subr.bf16.mxu0 0
      %898 = vmatpush2.bf16.msra.mxu0 0
      %899 = vmatprep.subr.bf16.mxu0 0
      %900 = vmatpush2.bf16.msra.mxu0 0
      %901 = vmatprep.subr.bf16.mxu0 0
      %902 = vmatpush2.bf16.msra.mxu0 0
      %903 = vmatprep.subr.bf16.mxu0 0
      %904 = vmatpush2.bf16.msra.mxu0 0
      %905 = vmatprep.subr.bf16.mxu0 0
      %906 = vmatpush2.bf16.msra.mxu0 0
      %907 = vmatprep.subr.bf16.mxu0 0
      %908 = vmatpush2.bf16.msra.mxu0 0
      %909 = vmatprep.subr.bf16.mxu0 0
      %910 = vmatpush2.bf16.msra.mxu0 0
      %911 = vmatprep.subr.bf16.mxu0 0
      %912 = vmatpush2.bf16.msra.mxu0 0
      %913 = vmatprep.mubr.bf16.mxu0 0
      %914 = vmatmul.mubr.bf16.gmra.mxu0 %v879
      %v915 = vpop.f32.mrf.mxu0
      %v916 = vadd.f32 %v864, %v915
      %v917 = vpop.f32.mrf.mxu0
      %v918 = vpop.f32.mrf.mxu0
      %v919 = vpop.f32.mrf.mxu0
      %920 = vdwg.mxu0
      %v921 = vsel %vm347, %v916, 0.0
      %v922 = vrot.slane %v921, 4
      %v923 = vadd.f32 %v921, %v922
      %v924 = vrot.slane %v923, 2
      %v925 = vadd.f32 %v923, %v924
      %v926 = vrot.slane %v925, 1
      %v927 = vadd.f32 %v925, %v926
      %v928 = vmul.f32 %v916, %v916
      %v929 = vsel %vm347, %v928, 0.0
      %v930 = vrot.slane %v929, 4
      %v931 = vadd.f32 %v929, %v930
      %v932 = vrot.slane %v931, 2
      %v933 = vadd.f32 %v931, %v932
      %v934 = vrot.slane %v933, 1
      %v935 = vadd.f32 %v933, %v934
      %vm936 = vcmask 1040384
      %v937 = vsel %vm936, %v927, %v935
      %vm938 = vcmask 254976
      %939 = vst.msk [vmem:[%s309] sm:$0x3] %vm938, %v937
      %v940 = vrcp.pop 8.0
      %v941 = vmul.f32 %v927, %v940
      %vm942 = vcmask 253952
      %943 = vst.msk [vmem:[%s305] sm:$0x1] %vm942, %v941
      %p944 = scmp.lt.s32.totalorder %s20, 1
      %s945 = scalar_select %p944, %s20, 1
      %s946 = scalar_lea.vmem %s7, %s945
      %p947 = scmp.lt.s32.totalorder %s20, 1
      %s948 = scalar_select %p947, %s20, 1
      %s949 = smul.addr %s948, 2
      %s950 = scalar_lea.vmem %s8, %s949
      // Predicated region
      $region49: #{timeseries_forward.3} parent=47 // pred_check
        %p951 = pneg %p190
      $region50: #{timeseries_forward.3} parent=47 // pred_check_branch
        %953 = sbr.rel (%p951) target = $region52
      $region51: #{timeseries_forward.3} parent=47 // pred_region
        _
      $region52: #{timeseries_forward.3} parent=47 // pred_fallthru
        _
      // Predicated region
      $region53: #{timeseries_forward.3} parent=47 // pred_check
        %p954 = pneg %p216
      $region54: #{timeseries_forward.3} parent=47 // pred_check_branch
        %956 = sbr.rel (%p954) target = $region56
      $region55: #{timeseries_forward.3} parent=47 // pred_region
        _
      $region56: #{timeseries_forward.3} parent=47 // pred_fallthru
        _
    $region48: #{timeseries_forward.3} parent=5 // pred_fallthru
      _
    %p957 = scmp.le.s32.totalorder 2, %s15
    // Predicated region
    $region57: #{timeseries_forward.3} parent=5 // pred_check
      %p958 = pneg %p957
    $region58: #{timeseries_forward.3} parent=5 // pred_check_branch
      %960 = sbr.rel (%p958) target = $region60
    $region59: #{timeseries_forward.3} parent=5 // pred_region
      %s961 = ssub.s32 %s15, 2
      // Predicated region
      $region61: #{timeseries_forward.3} parent=59 // pred_check
        %p962 = pneg %p196
      $region62: #{timeseries_forward.3} parent=59 // pred_check_branch
        %964 = sbr.rel (%p962) target = $region64
      $region63: #{timeseries_forward.3} parent=59 // pred_region
        %p965 = scmp.lt.s32.totalorder %s21, 1
        %s966 = scalar_select %p965, %s21, 1
        %s967 = scalar_lea.vmem %s7, %s966
      $region64: #{timeseries_forward.3} parent=59 // pred_fallthru
        _
      // Predicated region
      $region65: #{timeseries_forward.3} parent=59 // pred_check
        %p968 = pneg %p222
      $region66: #{timeseries_forward.3} parent=59 // pred_check_branch
        %970 = sbr.rel (%p968) target = $region68
      $region67: #{timeseries_forward.3} parent=59 // pred_region
        %p971 = scmp.lt.s32.totalorder %s21, 1
        %s972 = scalar_select %p971, %s21, 1
        %s973 = smul.addr %s972, 2
        %s974 = scalar_lea.vmem %s8, %s973
      $region68: #{timeseries_forward.3} parent=59 // pred_fallthru
        _
    $region60: #{timeseries_forward.3} parent=5 // pred_fallthru
      _
  $region6: #{timeseries_forward.3} parent=0 // loop_footer
    %s19 = sadd.s32 1, %s15
  $region7: #{timeseries_forward.3} parent=0 // loop_footer_branch
    %14 = sbr.rel target = $region3
  $region8: #{timeseries_forward.3} parent=0 // loop_exit
    _

</llo_original>
